<compile_context>
chip_gen: v7x
topology: tpu7x:2x2x1
jax: 0.10.0
libtpu: 0.0.40
codegen_flags: <defaults>
</compile_context>

<pallas_src>
import jax
import jax.numpy as jnp
from jax.experimental import pallas as pl
from jax.experimental.pallas import tpu as pltpu


# ------------------------- shared conv tile -------------------------

def _conv_tile(xp_ref, w_ref, b_ref):
    """3x3 conv (stride 1, halo pre-padded) + bias for one (image, 128-ch) tile.

    xp_ref : (1, H+2, W+2, Cin)  f32 padded NHWC input
    w_ref  : (9*Cin, CT)         bf16 weights, K flattened as kh*3*Cin + kw*Cin + ci
    b_ref  : (1, CT)             f32 bias (lane-dense channel tile)
    returns: (H*W, CT)           f32 accumulator
    """
    _, Hp, Wp, Cin = xp_ref.shape
    H, W = Hp - 2, Wp - 2
    # im2col: nine shifted (H*W, Cin) views concatenated along K, so the conv is a
    # single K=9*Cin bf16 MXU contraction instead of nine K=Cin starved matmuls.
    # (W is a multiple of 8 here, so the (H,W,Cin)->(H*W,Cin) reshape is layout-free.)
    cols = []
    for kh in range(3):
        for kw in range(3):
            cols.append(xp_ref[0, kh:kh + H, kw:kw + W, :].reshape(H * W, Cin))
    patch = jnp.concatenate(cols, axis=-1).astype(jnp.bfloat16)      # (H*W, 9*Cin)
    acc = jnp.dot(patch, w_ref[...], preferred_element_type=jnp.float32)
    return acc + b_ref[...]                                          # (H*W, CT) f32


# ------------------------- kernels -------------------------

def _conv_stats_kernel(xp_ref, w_ref, b_ref, sum_ref, sq_ref):
    """Pass 1: conv + bias -> per-(image, ch-tile) sum and sum-of-squares partials."""
    CT = w_ref.shape[-1]
    acc = _conv_tile(xp_ref, w_ref, b_ref)                           # (H*W, CT) f32
    sum_ref[...] = jnp.sum(acc, axis=0, keepdims=True).reshape(1, 1, CT)
    sq_ref[...] = jnp.sum(acc * acc, axis=0, keepdims=True).reshape(1, 1, CT)


def _conv_bn_relu_kernel(xp_ref, w_ref, b_ref, scale_ref, shift_ref, o_ref):
    """Pass 2: recompute conv tile, apply BN scale/shift + ReLU, lane-dense store."""
    _, H, W, CT = o_ref.shape
    acc = _conv_tile(xp_ref, w_ref, b_ref)                           # (H*W, CT) f32
    y = jnp.maximum(acc * scale_ref[...] + shift_ref[...], 0.0)
    o_ref[...] = y.reshape(1, H, W, CT)


# ------------------------- wrapper -------------------------

def conv_batch_relu(x_nchw, weight_oihw, bias, gamma, beta, eps=1e-5):
    N, Cin, H, W = x_nchw.shape
    Cout = weight_oihw.shape[0]

    # Channel tiling: pad Cout up to a multiple of 128 so every MXU output and
    # every store is lane-dense (earlier feedback: masked vst at <128 lanes was the
    # top store lever). Padded channels get zero weight/bias/gamma/beta and are
    # sliced off at the end.
    CT = 128
    Cp = ((Cout + CT - 1) // CT) * CT
    n_ct = Cp // CT

    # NCHW -> NHWC (channels on lanes).
    # TODO(synk): accept/return NHWC at the model boundary to drop both transposes.
    x = jnp.transpose(x_nchw, (0, 2, 3, 1)).astype(jnp.float32)
    # 1-pixel zero halo kept in the wrapper (tiny vs the conv itself).
    # TODO(synk): for large H*W, switch to H-row halo tiling with in-kernel zero fill.
    xp = jnp.pad(x, ((0, 0), (1, 1), (1, 1), (0, 0)))

    # (O,I,KH,KW) -> (KH,KW,I,O) -> (9*Cin, Cp) bf16 MXU operand.
    w = jnp.transpose(weight_oihw, (2, 3, 1, 0)).reshape(9 * Cin, Cout)
    w = jnp.pad(w, ((0, 0), (0, Cp - Cout))).astype(jnp.bfloat16)
    b = jnp.pad(bias.astype(jnp.float32), (0, Cp - Cout)).reshape(1, Cp)

    conv_in_specs = [
        pl.BlockSpec((1, H + 2, W + 2, Cin), lambda n, jc: (n, 0, 0, 0)),
        pl.BlockSpec((9 * Cin, CT), lambda n, jc: (0, jc)),
        pl.BlockSpec((1, CT), lambda n, jc: (0, jc)),
    ]
    # Per-step VMEM footprint (double-buffered padded-input tile + (H*W,CT) f32
    # accumulator + output tile) stays far below the 32 MiB scoped limit.
    cparams = pltpu.CompilerParams(
        dimension_semantics=("parallel", "parallel"),
        vmem_limit_bytes=32 * 1024 * 1024)

    # ---- pass 1: conv + bias -> fused BN batch statistics (no y written to HBM) ----
    psum, psq = pl.pallas_call(
        _conv_stats_kernel,
        out_shape=(
            jax.ShapeDtypeStruct((N, 1, Cp), jnp.float32),
            jax.ShapeDtypeStruct((N, 1, Cp), jnp.float32),
        ),
        grid=(N, n_ct),
        in_specs=conv_in_specs,
        out_specs=(
            pl.BlockSpec((1, 1, CT), lambda n, jc: (n, 0, jc)),
            pl.BlockSpec((1, 1, CT), lambda n, jc: (n, 0, jc)),
        ),
        compiler_params=cparams,
    )(xp, w, b)

    # ---- BN scale/shift from partials (tiny per-channel math, stays in XLA) ----
    count = float(N * H * W)
    s = jnp.sum(psum[:, 0, :], axis=0)                      # (Cp,)
    sq = jnp.sum(psq[:, 0, :], axis=0)
    mean = s / count
    var = jnp.maximum(sq / count - mean * mean, 0.0)        # clamp: cancellation safety
    inv = jax.lax.rsqrt(var + eps)
    gamma_p = jnp.pad(gamma.astype(jnp.float32), (0, Cp - Cout))
    beta_p = jnp.pad(beta.astype(jnp.float32), (0, Cp - Cout))
    scale = (gamma_p * inv).reshape(1, Cp)
    shift = (beta_p - mean * gamma_p * inv).reshape(1, Cp)

    # ---- pass 2: recompute conv + BN scale/shift + ReLU, single lane-dense write ----
    out = pl.pallas_call(
        _conv_bn_relu_kernel,
        out_shape=jax.ShapeDtypeStruct((N, H, W, Cp), jnp.float32),
        grid=(N, n_ct),
        in_specs=conv_in_specs + [
            pl.BlockSpec((1, CT), lambda n, jc: (0, jc)),
            pl.BlockSpec((1, CT), lambda n, jc: (0, jc)),
        ],
        out_specs=pl.BlockSpec((1, H, W, CT), lambda n, jc: (n, 0, 0, jc)),
        compiler_params=cparams,
    )(xp, w, b, scale, shift)

    out = out[..., :Cout]
    return jnp.transpose(out, (0, 3, 1, 2))                 # back to NCHW


# ---------------- pure-JAX reference (correctness check) ----------------

def _ref_forward(x_nchw, weight_oihw, bias, gamma, beta, eps=1e-5):
    y = jax.lax.conv_general_dilated(
        x_nchw, weight_oihw, window_strides=(1, 1), padding=((1, 1), (1, 1)),
        dimension_numbers=("NCHW", "OIHW", "NCHW"))
    y = y + bias[None, :, None, None]
    mean = jnp.mean(y, axis=(0, 2, 3), keepdims=True)
    var = jnp.var(y, axis=(0, 2, 3), keepdims=True)
    yn = (y - mean) * jax.lax.rsqrt(var + eps)
    yn = yn * gamma[None, :, None, None] + beta[None, :, None, None]
    return jnp.maximum(yn, 0.0)


if __name__ == "__main__":
    N, Cin, Cout, H, W = 2, 4, 8, 16, 16

    key = jax.random.PRNGKey(0)
    kx, kw, kb = jax.random.split(key, 3)
    x = jax.random.normal(kx, (N, Cin, H, W), jnp.float32)
    weight = jax.random.normal(kw, (Cout, Cin, 3, 3), jnp.float32) * 0.1
    bias = jax.random.normal(kb, (Cout,), jnp.float32) * 0.1
    gamma = jnp.ones((Cout,), jnp.float32)   # BatchNorm2d default affine init
    beta = jnp.zeros((Cout,), jnp.float32)

    out = conv_batch_relu(x, weight, bias, gamma, beta)
    out = jax.block_until_ready(out)

    ref = _ref_forward(x, weight, bias, gamma, beta)
    assert out.shape == (N, Cout, H, W)
    # bf16 MXU operands (f32 accumulation) => ~1e-2-level agreement with f32 reference.
    assert jnp.allclose(out, ref, atol=2e-2, rtol=2e-2), "mismatch vs JAX reference"

    print("KERNEL_OK")
</pallas_src>

<mosaic_0001>
module attributes {stable_mosaic.version = 11 : i64} {
  func.func @_conv_stats_kernel(%arg0: i32, %arg1: i32, %arg2: memref<1x18x18x4xf32, #tpu.memory_space<vmem>>, %arg3: memref<36x128xbf16, #tpu.memory_space<vmem>>, %arg4: memref<1x128xf32, #tpu.memory_space<vmem>>, %arg5: memref<1x1x128xf32, #tpu.memory_space<vmem>>, %arg6: memref<1x1x128xf32, #tpu.memory_space<vmem>>) attributes {dimension_semantics = [#tpu.dimension_semantics<parallel>, #tpu.dimension_semantics<parallel>], iteration_bounds = array<i64: 2, 1>, scalar_prefetch = 0 : i64, scratch_operands = 0 : i64, tpu.core_type = #tpu.core_type<tc>, window_params = [{transform_indices = @transform_0, window_bounds = array<i64: 1, 18, 18, 4>}, {transform_indices = @transform_1, window_bounds = array<i64: 36, 128>}, {transform_indices = @transform_2, window_bounds = array<i64: 1, 128>}, {transform_indices = @transform_3, window_bounds = array<i64: 1, 1, 128>}, {transform_indices = @transform_4, window_bounds = array<i64: 1, 1, 128>}]} {
    %c0 = arith.constant 0 : index
    %c0_0 = arith.constant 0 : index
    %c0_1 = arith.constant 0 : index
    %c0_2 = arith.constant 0 : index
    %0 = vector.load %arg2[%c0, %c0_0, %c0_1, %c0_2] : memref<1x18x18x4xf32, #tpu.memory_space<vmem>>, vector<1x16x16x4xf32>
    %1 = vector.shape_cast %0 : vector<1x16x16x4xf32> to vector<16x16x4xf32>
    %2 = vector.shape_cast %1 : vector<16x16x4xf32> to vector<256x4xf32>
    %c0_3 = arith.constant 0 : index
    %c0_4 = arith.constant 0 : index
    %c1 = arith.constant 1 : index
    %c0_5 = arith.constant 0 : index
    %3 = vector.load %arg2[%c0_3, %c0_4, %c1, %c0_5] : memref<1x18x18x4xf32, #tpu.memory_space<vmem>>, vector<1x16x16x4xf32>
    %4 = vector.shape_cast %3 : vector<1x16x16x4xf32> to vector<16x16x4xf32>
    %5 = vector.shape_cast %4 : vector<16x16x4xf32> to vector<256x4xf32>
    %c0_6 = arith.constant 0 : index
    %c0_7 = arith.constant 0 : index
    %c2 = arith.constant 2 : index
    %c0_8 = arith.constant 0 : index
    %6 = vector.load %arg2[%c0_6, %c0_7, %c2, %c0_8] : memref<1x18x18x4xf32, #tpu.memory_space<vmem>>, vector<1x16x16x4xf32>
    %7 = vector.shape_cast %6 : vector<1x16x16x4xf32> to vector<16x16x4xf32>
    %8 = vector.shape_cast %7 : vector<16x16x4xf32> to vector<256x4xf32>
    %c0_9 = arith.constant 0 : index
    %c1_10 = arith.constant 1 : index
    %c0_11 = arith.constant 0 : index
    %c0_12 = arith.constant 0 : index
    %9 = vector.load %arg2[%c0_9, %c1_10, %c0_11, %c0_12] : memref<1x18x18x4xf32, #tpu.memory_space<vmem>>, vector<1x16x16x4xf32>
    %10 = vector.shape_cast %9 : vector<1x16x16x4xf32> to vector<16x16x4xf32>
    %11 = vector.shape_cast %10 : vector<16x16x4xf32> to vector<256x4xf32>
    %c0_13 = arith.constant 0 : index
    %c1_14 = arith.constant 1 : index
    %c1_15 = arith.constant 1 : index
    %c0_16 = arith.constant 0 : index
    %12 = vector.load %arg2[%c0_13, %c1_14, %c1_15, %c0_16] : memref<1x18x18x4xf32, #tpu.memory_space<vmem>>, vector<1x16x16x4xf32>
    %13 = vector.shape_cast %12 : vector<1x16x16x4xf32> to vector<16x16x4xf32>
    %14 = vector.shape_cast %13 : vector<16x16x4xf32> to vector<256x4xf32>
    %c0_17 = arith.constant 0 : index
    %c1_18 = arith.constant 1 : index
    %c2_19 = arith.constant 2 : index
    %c0_20 = arith.constant 0 : index
    %15 = vector.load %arg2[%c0_17, %c1_18, %c2_19, %c0_20] : memref<1x18x18x4xf32, #tpu.memory_space<vmem>>, vector<1x16x16x4xf32>
    %16 = vector.shape_cast %15 : vector<1x16x16x4xf32> to vector<16x16x4xf32>
    %17 = vector.shape_cast %16 : vector<16x16x4xf32> to vector<256x4xf32>
    %c0_21 = arith.constant 0 : index
    %c2_22 = arith.constant 2 : index
    %c0_23 = arith.constant 0 : index
    %c0_24 = arith.constant 0 : index
    %18 = vector.load %arg2[%c0_21, %c2_22, %c0_23, %c0_24] : memref<1x18x18x4xf32, #tpu.memory_space<vmem>>, vector<1x16x16x4xf32>
    %19 = vector.shape_cast %18 : vector<1x16x16x4xf32> to vector<16x16x4xf32>
    %20 = vector.shape_cast %19 : vector<16x16x4xf32> to vector<256x4xf32>
    %c0_25 = arith.constant 0 : index
    %c2_26 = arith.constant 2 : index
    %c1_27 = arith.constant 1 : index
    %c0_28 = arith.constant 0 : index
    %21 = vector.load %arg2[%c0_25, %c2_26, %c1_27, %c0_28] : memref<1x18x18x4xf32, #tpu.memory_space<vmem>>, vector<1x16x16x4xf32>
    %22 = vector.shape_cast %21 : vector<1x16x16x4xf32> to vector<16x16x4xf32>
    %23 = vector.shape_cast %22 : vector<16x16x4xf32> to vector<256x4xf32>
    %c0_29 = arith.constant 0 : index
    %c2_30 = arith.constant 2 : index
    %c2_31 = arith.constant 2 : index
    %c0_32 = arith.constant 0 : index
    %24 = vector.load %arg2[%c0_29, %c2_30, %c2_31, %c0_32] : memref<1x18x18x4xf32, #tpu.memory_space<vmem>>, vector<1x16x16x4xf32>
    %25 = vector.shape_cast %24 : vector<1x16x16x4xf32> to vector<16x16x4xf32>
    %26 = vector.shape_cast %25 : vector<16x16x4xf32> to vector<256x4xf32>
    %27 = tpu.concatenate %2, %5, %8, %11, %14, %17, %20, %23, %26 in 1 : vector<256x4xf32>, vector<256x4xf32>, vector<256x4xf32>, vector<256x4xf32>, vector<256x4xf32>, vector<256x4xf32>, vector<256x4xf32>, vector<256x4xf32>, vector<256x4xf32> -> vector<256x36xf32>
    %28 = arith.truncf %27 : vector<256x36xf32> to vector<256x36xbf16>
    %c0_33 = arith.constant 0 : index
    %c0_34 = arith.constant 0 : index
    %29 = vector.load %arg3[%c0_33, %c0_34] : memref<36x128xbf16, #tpu.memory_space<vmem>>, vector<36x128xbf16>
    %cst = arith.constant dense<0.000000e+00> : vector<256x128xf32>
    %30 = tpu.matmul %28, %29, %cst {dimension_numbers = #tpu.dot_dimension_numbers<[1], [0], [0], [1], [0, 0, 1, 1], [], []>} : vector<256x36xbf16>, vector<36x128xbf16>, vector<256x128xf32> -> vector<256x128xf32>
    %c0_35 = arith.constant 0 : index
    %c0_36 = arith.constant 0 : index
    %31 = vector.load %arg4[%c0_35, %c0_36] : memref<1x128xf32, #tpu.memory_space<vmem>>, vector<1x128xf32>
    %32 = vector.broadcast %31 : vector<1x128xf32> to vector<256x128xf32>
    %33 = arith.addf %30, %32 : vector<256x128xf32>
    %cst_37 = arith.constant dense<0.000000e+00> : vector<128xf32>
    %34 = vector.multi_reduction <add>, %33, %cst_37 [0] : vector<256x128xf32> to vector<128xf32>
    %35 = vector.shape_cast %34 : vector<128xf32> to vector<1x128xf32>
    %36 = vector.shape_cast %35 : vector<1x128xf32> to vector<1x1x128xf32>
    %c0_38 = arith.constant 0 : index
    %c0_39 = arith.constant 0 : index
    %c0_40 = arith.constant 0 : index
    %37 = vector.load %arg5[%c0_38, %c0_39, %c0_40] : memref<1x1x128xf32, #tpu.memory_space<vmem>>, vector<1x1x128xf32>
    tpu.vector_store %arg5[%c0_38, %c0_39, %c0_40], %36 {strides = array<i32>} : memref<1x1x128xf32, #tpu.memory_space<vmem>>, vector<1x1x128xf32>,
    %38 = arith.mulf %33, %33 : vector<256x128xf32>
    %cst_41 = arith.constant dense<0.000000e+00> : vector<128xf32>
    %39 = vector.multi_reduction <add>, %38, %cst_41 [0] : vector<256x128xf32> to vector<128xf32>
    %40 = vector.shape_cast %39 : vector<128xf32> to vector<1x128xf32>
    %41 = vector.shape_cast %40 : vector<1x128xf32> to vector<1x1x128xf32>
    %c0_42 = arith.constant 0 : index
    %c0_43 = arith.constant 0 : index
    %c0_44 = arith.constant 0 : index
    %42 = vector.load %arg6[%c0_42, %c0_43, %c0_44] : memref<1x1x128xf32, #tpu.memory_space<vmem>>, vector<1x1x128xf32>
    tpu.vector_store %arg6[%c0_42, %c0_43, %c0_44], %41 {strides = array<i32>} : memref<1x1x128xf32, #tpu.memory_space<vmem>>, vector<1x1x128xf32>,
    return
  }
  func.func @transform_0(%arg0: i32, %arg1: i32) -> (i32, i32, i32, i32) {
    %c0_i32 = arith.constant 0 : i32
    %c0_i32_0 = arith.constant 0 : i32
    %c0_i32_1 = arith.constant 0 : i32
    %c0_i32_2 = arith.constant 0 : i32
    return %arg0, %c0_i32, %c0_i32_0, %c0_i32_1 : i32, i32, i32, i32
  }
  func.func @transform_1(%arg0: i32, %arg1: i32) -> (i32, i32) {
    %c0_i32 = arith.constant 0 : i32
    %c0_i32_0 = arith.constant 0 : i32
    return %c0_i32, %arg1 : i32, i32
  }
  func.func @transform_2(%arg0: i32, %arg1: i32) -> (i32, i32) {
    %c0_i32 = arith.constant 0 : i32
    %c0_i32_0 = arith.constant 0 : i32
    return %c0_i32, %arg1 : i32, i32
  }
  func.func @transform_3(%arg0: i32, %arg1: i32) -> (i32, i32, i32) {
    %c0_i32 = arith.constant 0 : i32
    %c0_i32_0 = arith.constant 0 : i32
    return %arg0, %c0_i32, %arg1 : i32, i32, i32
  }
  func.func @transform_4(%arg0: i32, %arg1: i32) -> (i32, i32, i32) {
    %c0_i32 = arith.constant 0 : i32
    %c0_i32_0 = arith.constant 0 : i32
    return %arg0, %c0_i32, %arg1 : i32, i32, i32
  }
}

</mosaic_0001>

<llo_original>
// kernel: tpu_custom_call.1
$region0: #{tpu_custom_call.1}
  #allocation0 [shape = 'u32[]', space=smem, size = 0x4, offset = 0x4, fixed_abs, tag = 'smem constant byte address 0x4 - core index']
  #allocation1 [shape = 'u32[144,128]{1,0:T(1,128)}', space=vmem, size = 0x12000, scoped, tag = 'internal scratch']
  %s0 = inlined_call_operand.vmem [shape: f32[2,18,18,4], index: 0, kind: input, shape index: {}]
  %s1 = inlined_call_operand.vmem [shape: bf16[36,128], index: 1, kind: input, shape index: {}]
  %s2 = inlined_call_operand.vmem [shape: f32[1,128], index: 2, kind: input, shape index: {}]
  %s3 = inlined_call_operand.hbm [shape: f32[2,1,128], index: 3, kind: output, shape index: {0}]
  %s4 = inlined_call_operand.hbm [shape: f32[2,1,128], index: 4, kind: output, shape index: {1}]
  %5 = xla_tuple %s3, %s4
  %s6 = sld [smem:[#allocation0]]
  $region53: #{tpu_custom_call.1} parent=0
    _
  %s8 = ssub.s32 1, %s6
  %s9 = scalar_select 0, %s8, %s6
  $region1: #{tpu_custom_call.1} parent=0
    #allocation2 [shape = 'u8[1024]{0}', space=vmem, size = 0x400, scoped, tag = 'output window, operand 0']
    #allocation3 [shape = 's32[2]{0}', space=sflag, size = 0x8, scoped, tag = 'scoped memory for tpu_custom_call.1']
    #allocation4 [shape = 'u8[1024]{0}', space=vmem, size = 0x400, scoped, tag = 'output window, operand 1']
    #allocation5 [shape = 's32[2]{0}', space=sflag, size = 0x8, scoped, tag = 'scoped memory for tpu_custom_call.1']
    %10 = vsyncpa [#allocation3], 0
    %s11 = scalar_lea.sflag [#allocation3], 1
    %12 = vsyncpa %s11, 0
    %13 = vsyncpa [#allocation5], 0
    %s14 = scalar_lea.sflag [#allocation5], 1
    %15 = vsyncpa %s14, 0
    loop: start=0, step=1, limit=4
    $region2: #{tpu_custom_call.1} parent=1 // loop_pre_header
      _
    $region3: #{tpu_custom_call.1} parent=1 // loop_header
      %s17 = sphi 0, %s21
      %p18 = scmp.ge.s32.totalorder %s17, 4
      %s24 = sphi 0, %s36
      %s25 = sphi 0, %s32
      %s26 = sphi 0, %s24
      %s27 = sphi 0, %s25
      %s28 = sphi 0, %s26
      %s29 = sphi 0, %s27
      %s39 = sphi 0, %s41
      %s42 = sphi 0, %s39
      %s43 = sphi 0, %s42
      %s59 = sphi 0, %s43
      %s65 = sphi 0, %s67
      %s68 = sphi 0, %s65
      %s69 = sphi 0, %s68
      %s85 = sphi 0, %s69
      %s91 = sphi 0, %s93
      %s94 = sphi 0, %s91
      %s95 = sphi 0, %s94
      %s111 = sphi 0, %s95
      %s119 = sphi 0, %s121
      %s122 = sphi 0, %s119
      %s123 = sphi 0, %s122
      %s139 = sphi 0, %s123
      %s147 = sphi 0, %s149
      %s150 = sphi 0, %s147
      %s151 = sphi 0, %s150
      %s167 = sphi 0, %s151
    $region4: #{tpu_custom_call.1} parent=1 // loop_header_branch
      %20 = sbr.rel (%p18) target = $region8
    $region5: #{tpu_custom_call.1} parent=1 // loop_body
      %s22 = ssub.s32 %s17, 1
      %s23 = ssub.s32 %s17, 2
      %s30 = sadd.s32 1, %s25
      %p31 = scmp.ge.s32.totalorder %s30, 1
      %s32 = scalar_select %p31, 0, %s30
      %s33 = sadd.s32 1, %s24
      %s34 = scalar_select %p31, %s33, %s24
      %p35 = scmp.ge.s32.totalorder %s34, 2
      %s36 = scalar_select %p35, 0, %s34
      %s37 = ssub.s32 %s24, %s36
      %p38 = scmp.eq.s32.totalorder %s37, 0
      %s40 = sadd.s32 %s39, 1
      %s41 = scalar_select %p38, %s39, %s40
      %p44 = pneg %p38
      %p45 = scmp.eq.s32.totalorder %s17, 1
      %p46 = por %p44, %p45
      %p47 = scmp.ne.s32.totalorder %s39, %s42
      %p48 = scmp.eq.s32.totalorder %s17, 0
      %p49 = por %p47, %p48
      %p50 = scmp.ne.s32.totalorder %s39, %s42
      %p51 = scmp.eq.s32.totalorder %s22, 1
      %p52 = por %p50, %p51
      %p53 = scmp.ne.s32.totalorder %s42, %s43
      %p54 = scmp.eq.s32.totalorder %s22, 0
      %p55 = por %p53, %p54
      %p56 = scmp.ne.s32.totalorder %s42, %s43
      %p57 = scmp.eq.s32.totalorder %s23, 1
      %p58 = por %p56, %p57
      %p60 = scmp.ne.s32.totalorder %s43, %s59
      %p61 = scmp.eq.s32.totalorder %s23, 0
      %p62 = por %p60, %p61
      %s63 = ssub.s32 %s25, %s32
      %p64 = scmp.eq.s32.totalorder %s63, 0
      %s66 = sadd.s32 %s65, 1
      %s67 = scalar_select %p64, %s65, %s66
      %p70 = pneg %p64
      %p71 = scmp.eq.s32.totalorder %s17, 1
      %p72 = por %p70, %p71
      %p73 = scmp.ne.s32.totalorder %s65, %s68
      %p74 = scmp.eq.s32.totalorder %s17, 0
      %p75 = por %p73, %p74
      %p76 = scmp.ne.s32.totalorder %s65, %s68
      %p77 = scmp.eq.s32.totalorder %s22, 1
      %p78 = por %p76, %p77
      %p79 = scmp.ne.s32.totalorder %s68, %s69
      %p80 = scmp.eq.s32.totalorder %s22, 0
      %p81 = por %p79, %p80
      %p82 = scmp.ne.s32.totalorder %s68, %s69
      %p83 = scmp.eq.s32.totalorder %s23, 1
      %p84 = por %p82, %p83
      %p86 = scmp.ne.s32.totalorder %s69, %s85
      %p87 = scmp.eq.s32.totalorder %s23, 0
      %p88 = por %p86, %p87
      %s89 = ssub.s32 %s25, %s32
      %p90 = scmp.eq.s32.totalorder %s89, 0
      %s92 = sadd.s32 %s91, 1
      %s93 = scalar_select %p90, %s91, %s92
      %p96 = pneg %p90
      %p97 = scmp.eq.s32.totalorder %s17, 1
      %p98 = por %p96, %p97
      %p99 = scmp.ne.s32.totalorder %s91, %s94
      %p100 = scmp.eq.s32.totalorder %s17, 0
      %p101 = por %p99, %p100
      %p102 = scmp.ne.s32.totalorder %s91, %s94
      %p103 = scmp.eq.s32.totalorder %s22, 1
      %p104 = por %p102, %p103
      %p105 = scmp.ne.s32.totalorder %s94, %s95
      %p106 = scmp.eq.s32.totalorder %s22, 0
      %p107 = por %p105, %p106
      %p108 = scmp.ne.s32.totalorder %s94, %s95
      %p109 = scmp.eq.s32.totalorder %s23, 1
      %p110 = por %p108, %p109
      %p112 = scmp.ne.s32.totalorder %s95, %s111
      %p113 = scmp.eq.s32.totalorder %s23, 0
      %p114 = por %p112, %p113
      %s115 = ssub.s32 %s24, %s36
      %s116 = ssub.s32 %s25, %s32
      %s117 = sor.u32 %s115, %s116
      %p118 = scmp.eq.s32.totalorder %s117, 0
      %s120 = sadd.s32 %s119, 1
      %s121 = scalar_select %p118, %s119, %s120
      %p124 = pneg %p118
      %p125 = scmp.eq.s32.totalorder %s17, 1
      %p126 = por %p124, %p125
      %p127 = scmp.ne.s32.totalorder %s119, %s122
      %p128 = scmp.eq.s32.totalorder %s17, 0
      %p129 = por %p127, %p128
      %p130 = scmp.ne.s32.totalorder %s119, %s122
      %p131 = scmp.eq.s32.totalorder %s22, 1
      %p132 = por %p130, %p131
      %p133 = scmp.ne.s32.totalorder %s122, %s123
      %p134 = scmp.eq.s32.totalorder %s22, 0
      %p135 = por %p133, %p134
      %p136 = scmp.ne.s32.totalorder %s122, %s123
      %p137 = scmp.eq.s32.totalorder %s23, 1
      %p138 = por %p136, %p137
      %p140 = scmp.ne.s32.totalorder %s123, %s139
      %p141 = scmp.eq.s32.totalorder %s23, 0
      %p142 = por %p140, %p141
      %s143 = ssub.s32 %s24, %s36
      %s144 = ssub.s32 %s25, %s32
      %s145 = sor.u32 %s143, %s144
      %p146 = scmp.eq.s32.totalorder %s145, 0
      %s148 = sadd.s32 %s147, 1
      %s149 = scalar_select %p146, %s147, %s148
      %p152 = pneg %p146
      %p153 = scmp.eq.s32.totalorder %s17, 1
      %p154 = por %p152, %p153
      %p155 = scmp.ne.s32.totalorder %s147, %s150
      %p156 = scmp.eq.s32.totalorder %s17, 0
      %p157 = por %p155, %p156
      %p158 = scmp.ne.s32.totalorder %s147, %s150
      %p159 = scmp.eq.s32.totalorder %s22, 1
      %p160 = por %p158, %p159
      %p161 = scmp.ne.s32.totalorder %s150, %s151
      %p162 = scmp.eq.s32.totalorder %s22, 0
      %p163 = por %p161, %p162
      %p164 = scmp.ne.s32.totalorder %s150, %s151
      %p165 = scmp.eq.s32.totalorder %s23, 1
      %p166 = por %p164, %p165
      %p168 = scmp.ne.s32.totalorder %s151, %s167
      %p169 = scmp.eq.s32.totalorder %s23, 0
      %p170 = por %p168, %p169
      %p171 = scmp.le.s32.totalorder 1, %s17
      %p172 = scmp.lt.s32.totalorder %s17, 3
      %p173 = pnand %p171, %p172
      %p174 = pneg %p173
      // Predicated region
      $region9: #{tpu_custom_call.1} parent=5 // pred_check
        _
      $region10: #{tpu_custom_call.1} parent=5 // pred_check_branch
        %176 = sbr.rel (%p173) target = $region12
      $region11: #{tpu_custom_call.1} parent=5 // pred_region
        %s177 = ssub.s32 %s17, 1
        // Predicated region
        $region13: #{tpu_custom_call.1} parent=11 // pred_check
          %p178 = pneg %p81
        $region14: #{tpu_custom_call.1} parent=11 // pred_check_branch
          %180 = sbr.rel (%p178) target = $region16
        $region15: #{tpu_custom_call.1} parent=11 // pred_region
          %p181 = scmp.lt.s32.totalorder %s27, 0
          %s182 = scalar_select %p181, %s27, 0
          %s183 = smul.addr %s182, 4
          %s184 = scalar_lea.vmem %s1, %s183
        $region16: #{tpu_custom_call.1} parent=11 // pred_fallthru
          _
        // Predicated region
        $region17: #{tpu_custom_call.1} parent=11 // pred_check
          %p185 = pneg %p107
        $region18: #{tpu_custom_call.1} parent=11 // pred_check_branch
          %187 = sbr.rel (%p185) target = $region20
        $region19: #{tpu_custom_call.1} parent=11 // pred_region
          %p188 = scmp.lt.s32.totalorder %s27, 0
          %s189 = scalar_select %p188, %s27, 0
          %s190 = scalar_lea.vmem %s2, %s189
        $region20: #{tpu_custom_call.1} parent=11 // pred_fallthru
          _
      $region12: #{tpu_custom_call.1} parent=5 // pred_fallthru
        _
      %p191 = scmp.lt.s32.totalorder %s17, 2
      // Predicated region
      $region21: #{tpu_custom_call.1} parent=5 // pred_check
        %p192 = pneg %p191
      $region22: #{tpu_custom_call.1} parent=5 // pred_check_branch
        %194 = sbr.rel (%p192) target = $region24
      $region23: #{tpu_custom_call.1} parent=5 // pred_region
        // Predicated region
        $region25: #{tpu_custom_call.1} parent=23 // pred_check
          %p195 = pneg %p49
        $region26: #{tpu_custom_call.1} parent=23 // pred_check_branch
          %197 = sbr.rel (%p195) target = $region28
        $region27: #{tpu_custom_call.1} parent=23 // pred_region
          %p198 = scmp.lt.s32.totalorder %s24, 1
          %s199 = scalar_select %p198, %s24, 1
          %s200 = smul.addr %s199, 54
          %s201 = smul.addr %s200, 8
          %s202 = scalar_lea.vmem %s0, %s201
        $region28: #{tpu_custom_call.1} parent=23 // pred_fallthru
          _
      $region24: #{tpu_custom_call.1} parent=5 // pred_fallthru
        _
      %p203 = scmp.le.s32.totalorder 1, %s17
      %p204 = scmp.lt.s32.totalorder %s17, 3
      %p205 = pnand %p203, %p204
      %p206 = pneg %p205
      // Predicated region
      $region29: #{tpu_custom_call.1} parent=5 // pred_check
        _
      $region30: #{tpu_custom_call.1} parent=5 // pred_check_branch
        %208 = sbr.rel (%p205) target = $region32
      $region31: #{tpu_custom_call.1} parent=5 // pred_region
        %s209 = ssub.s32 %s17, 1
        %p210 = scmp.lt.s32.totalorder %s26, 1
        %s211 = scalar_select %p210, %s26, 1
        %s212 = smul.addr %s211, 54
        %s213 = smul.addr %s212, 8
        %s214 = scalar_lea.vmem %s0, %s213
        %p215 = pneg %p55
        %p216 = pneg %p52
        %p217 = scmp.lt.s32.totalorder %s27, 0
        %s218 = scalar_select %p217, %s27, 0
        %s219 = smul.addr %s218, 4
        %s220 = scalar_lea.vmem %s1, %s219
        %p221 = pneg %p81
        %p222 = pneg %p78
        %p223 = scmp.lt.s32.totalorder %s27, 0
        %s224 = scalar_select %p223, %s27, 0
        %s225 = scalar_lea.vmem %s2, %s224
        %p226 = pneg %p107
        %p227 = pneg %p104
        %p228 = pneg %p135
        %p229 = pneg %p132
        %s230 = sand.u32 %s122, 1
        %s231 = scalar_lea.sflag [#allocation3], %s230
        %s232 = sand.u32 %s122, 1
        %s233 = scalar_lea.vmem [#allocation2], %s232
        %p234 = pneg %p163
        %p235 = pneg %p160
        %s236 = sand.u32 %s150, 1
        %s237 = scalar_lea.sflag [#allocation5], %s236
        %s238 = sand.u32 %s150, 1
        %s239 = scalar_lea.vmem [#allocation4], %s238
        %p240 = scmp.lt.s32.totalorder %s26, 1
        %s241 = scalar_select %p240, %s26, 1
        %s242 = smul.addr %s241, 54
        %s243 = smul.addr %s242, 8
        %s244 = scalar_lea.vmem %s0, %s243
        %p245 = scmp.lt.s32.totalorder %s27, 0
        %s246 = scalar_select %p245, %s27, 0
        %s247 = smul.addr %s246, 4
        %s248 = scalar_lea.vmem %s1, %s247
        %p249 = scmp.lt.s32.totalorder %s27, 0
        %s250 = scalar_select %p249, %s27, 0
        %s251 = scalar_lea.vmem %s2, %s250
        %v253 = vld [vmem:[%s244] sm:$0xff]
        %v254 = vld [vmem:[%s244 + $0x8] sm:$0xff]
        %v255 = vld [vmem:[%s244 + $0x18] sm:$0xff]
        %v256 = vld [vmem:[%s244 + $0x20] sm:$0xff]
        %v257 = vld [vmem:[%s244 + $0x30] sm:$0xff]
        %v258 = vld [vmem:[%s244 + $0x38] sm:$0xff]
        %v259 = vld [vmem:[%s244 + $0x48] sm:$0xff]
        %v260 = vld [vmem:[%s244 + $0x50] sm:$0xff]
        %v261 = vld [vmem:[%s244 + $0x60] sm:$0xff]
        %v262 = vld [vmem:[%s244 + $0x68] sm:$0xff]
        %v263 = vld [vmem:[%s244 + $0x78] sm:$0xff]
        %v264 = vld [vmem:[%s244 + $0x80] sm:$0xff]
        %v265 = vld [vmem:[%s244 + $0x90] sm:$0xff]
        %v266 = vld [vmem:[%s244 + $0x98] sm:$0xff]
        %v267 = vld [vmem:[%s244 + $0xa8] sm:$0xff]
        %v268 = vld [vmem:[%s244 + $0xb0] sm:$0xff]
        %v269 = vld [vmem:[%s244 + $0xc0] sm:$0xff]
        %v270 = vld [vmem:[%s244 + $0xc8] sm:$0xff]
        %v271 = vld [vmem:[%s244 + $0xd8] sm:$0xff]
        %v272 = vld [vmem:[%s244 + $0xe0] sm:$0xff]
        %v273 = vld [vmem:[%s244 + $0xf0] sm:$0xff]
        %v274 = vld [vmem:[%s244 + $0xf8] sm:$0xff]
        %v275 = vld [vmem:[%s244 + $0x108] sm:$0xff]
        %v276 = vld [vmem:[%s244 + $0x110] sm:$0xff]
        %v277 = vld [vmem:[%s244 + $0x120] sm:$0xff]
        %v278 = vld [vmem:[%s244 + $0x128] sm:$0xff]
        %v279 = vld [vmem:[%s244 + $0x138] sm:$0xff]
        %v280 = vld [vmem:[%s244 + $0x140] sm:$0xff]
        %v281 = vld [vmem:[%s244 + $0x150] sm:$0xff]
        %v282 = vld [vmem:[%s244 + $0x158] sm:$0xff]
        %v283 = vld [vmem:[%s244 + $0x168] sm:$0xff]
        %v284 = vld [vmem:[%s244 + $0x170] sm:$0xff]
        %v285 = vld [vmem:[%s244 + $0x1] sm:$0xff]
        %v286 = vld [vmem:[%s244 + $0x9] sm:$0xff]
        %v287 = vld [vmem:[%s244 + $0x19] sm:$0xff]
        %v288 = vld [vmem:[%s244 + $0x21] sm:$0xff]
        %v289 = vld [vmem:[%s244 + $0x31] sm:$0xff]
        %v290 = vld [vmem:[%s244 + $0x39] sm:$0xff]
        %v291 = vld [vmem:[%s244 + $0x49] sm:$0xff]
        %v292 = vld [vmem:[%s244 + $0x51] sm:$0xff]
        %v293 = vld [vmem:[%s244 + $0x61] sm:$0xff]
        %v294 = vld [vmem:[%s244 + $0x69] sm:$0xff]
        %v295 = vld [vmem:[%s244 + $0x79] sm:$0xff]
        %v296 = vld [vmem:[%s244 + $0x81] sm:$0xff]
        %v297 = vld [vmem:[%s244 + $0x91] sm:$0xff]
        %v298 = vld [vmem:[%s244 + $0x99] sm:$0xff]
        %v299 = vld [vmem:[%s244 + $0xa9] sm:$0xff]
        %v300 = vld [vmem:[%s244 + $0xb1] sm:$0xff]
        %v301 = vld [vmem:[%s244 + $0xc1] sm:$0xff]
        %v302 = vld [vmem:[%s244 + $0xc9] sm:$0xff]
        %v303 = vld [vmem:[%s244 + $0xd9] sm:$0xff]
        %v304 = vld [vmem:[%s244 + $0xe1] sm:$0xff]
        %v305 = vld [vmem:[%s244 + $0xf1] sm:$0xff]
        %v306 = vld [vmem:[%s244 + $0xf9] sm:$0xff]
        %v307 = vld [vmem:[%s244 + $0x109] sm:$0xff]
        %v308 = vld [vmem:[%s244 + $0x111] sm:$0xff]
        %v309 = vld [vmem:[%s244 + $0x121] sm:$0xff]
        %v310 = vld [vmem:[%s244 + $0x129] sm:$0xff]
        %v311 = vld [vmem:[%s244 + $0x139] sm:$0xff]
        %v312 = vld [vmem:[%s244 + $0x141] sm:$0xff]
        %v313 = vld [vmem:[%s244 + $0x151] sm:$0xff]
        %v314 = vld [vmem:[%s244 + $0x159] sm:$0xff]
        %v315 = vld [vmem:[%s244 + $0x169] sm:$0xff]
        %v316 = vld [vmem:[%s244 + $0x171] sm:$0xff]
        %v317 = vld [vmem:[%s244 + $0x2] sm:$0xff]
        %v318 = vld [vmem:[%s244 + $0xa] sm:$0xff]
        %v319 = vld [vmem:[%s244 + $0x1a] sm:$0xff]
        %v320 = vld [vmem:[%s244 + $0x22] sm:$0xff]
        %v321 = vld [vmem:[%s244 + $0x32] sm:$0xff]
        %v322 = vld [vmem:[%s244 + $0x3a] sm:$0xff]
        %v323 = vld [vmem:[%s244 + $0x4a] sm:$0xff]
        %v324 = vld [vmem:[%s244 + $0x52] sm:$0xff]
        %v325 = vld [vmem:[%s244 + $0x62] sm:$0xff]
        %v326 = vld [vmem:[%s244 + $0x6a] sm:$0xff]
        %v327 = vld [vmem:[%s244 + $0x7a] sm:$0xff]
        %v328 = vld [vmem:[%s244 + $0x82] sm:$0xff]
        %v329 = vld [vmem:[%s244 + $0x92] sm:$0xff]
        %v330 = vld [vmem:[%s244 + $0x9a] sm:$0xff]
        %v331 = vld [vmem:[%s244 + $0xaa] sm:$0xff]
        %v332 = vld [vmem:[%s244 + $0xb2] sm:$0xff]
        %v333 = vld [vmem:[%s244 + $0xc2] sm:$0xff]
        %v334 = vld [vmem:[%s244 + $0xca] sm:$0xff]
        %v335 = vld [vmem:[%s244 + $0xda] sm:$0xff]
        %v336 = vld [vmem:[%s244 + $0xe2] sm:$0xff]
        %v337 = vld [vmem:[%s244 + $0xf2] sm:$0xff]
        %v338 = vld [vmem:[%s244 + $0xfa] sm:$0xff]
        %v339 = vld [vmem:[%s244 + $0x10a] sm:$0xff]
        %v340 = vld [vmem:[%s244 + $0x112] sm:$0xff]
        %v341 = vld [vmem:[%s244 + $0x122] sm:$0xff]
        %v342 = vld [vmem:[%s244 + $0x12a] sm:$0xff]
        %v343 = vld [vmem:[%s244 + $0x13a] sm:$0xff]
        %v344 = vld [vmem:[%s244 + $0x142] sm:$0xff]
        %v345 = vld [vmem:[%s244 + $0x152] sm:$0xff]
        %v346 = vld [vmem:[%s244 + $0x15a] sm:$0xff]
        %v347 = vld [vmem:[%s244 + $0x16a] sm:$0xff]
        %v348 = vld [vmem:[%s244 + $0x172] sm:$0xff]
        %s349 = scalar_lea.vmem %s244, 24
        %v350 = vld [vmem:[%s349] sm:$0xff]
        %v351 = vld [vmem:[%s349 + $0x8] sm:$0xff]
        %v352 = vld [vmem:[%s349 + $0x18] sm:$0xff]
        %v353 = vld [vmem:[%s349 + $0x20] sm:$0xff]
        %v354 = vld [vmem:[%s349 + $0x30] sm:$0xff]
        %v355 = vld [vmem:[%s349 + $0x38] sm:$0xff]
        %v356 = vld [vmem:[%s349 + $0x48] sm:$0xff]
        %v357 = vld [vmem:[%s349 + $0x50] sm:$0xff]
        %v358 = vld [vmem:[%s349 + $0x60] sm:$0xff]
        %v359 = vld [vmem:[%s349 + $0x68] sm:$0xff]
        %v360 = vld [vmem:[%s349 + $0x78] sm:$0xff]
        %v361 = vld [vmem:[%s349 + $0x80] sm:$0xff]
        %v362 = vld [vmem:[%s349 + $0x90] sm:$0xff]
        %v363 = vld [vmem:[%s349 + $0x98] sm:$0xff]
        %v364 = vld [vmem:[%s349 + $0xa8] sm:$0xff]
        %v365 = vld [vmem:[%s349 + $0xb0] sm:$0xff]
        %v366 = vld [vmem:[%s349 + $0xc0] sm:$0xff]
        %v367 = vld [vmem:[%s349 + $0xc8] sm:$0xff]
        %v368 = vld [vmem:[%s349 + $0xd8] sm:$0xff]
        %v369 = vld [vmem:[%s349 + $0xe0] sm:$0xff]
        %v370 = vld [vmem:[%s349 + $0xf0] sm:$0xff]
        %v371 = vld [vmem:[%s349 + $0xf8] sm:$0xff]
        %v372 = vld [vmem:[%s349 + $0x108] sm:$0xff]
        %v373 = vld [vmem:[%s349 + $0x110] sm:$0xff]
        %v374 = vld [vmem:[%s349 + $0x120] sm:$0xff]
        %v375 = vld [vmem:[%s349 + $0x128] sm:$0xff]
        %v376 = vld [vmem:[%s349 + $0x138] sm:$0xff]
        %v377 = vld [vmem:[%s349 + $0x140] sm:$0xff]
        %v378 = vld [vmem:[%s349 + $0x150] sm:$0xff]
        %v379 = vld [vmem:[%s349 + $0x158] sm:$0xff]
        %v380 = vld [vmem:[%s349 + $0x168] sm:$0xff]
        %v381 = vld [vmem:[%s349 + $0x170] sm:$0xff]
        %v382 = vld [vmem:[%s349 + $0x1] sm:$0xff]
        %v383 = vld [vmem:[%s349 + $0x9] sm:$0xff]
        %v384 = vld [vmem:[%s349 + $0x19] sm:$0xff]
        %v385 = vld [vmem:[%s349 + $0x21] sm:$0xff]
        %v386 = vld [vmem:[%s349 + $0x31] sm:$0xff]
        %v387 = vld [vmem:[%s349 + $0x39] sm:$0xff]
        %v388 = vld [vmem:[%s349 + $0x49] sm:$0xff]
        %v389 = vld [vmem:[%s349 + $0x51] sm:$0xff]
        %v390 = vld [vmem:[%s349 + $0x61] sm:$0xff]
        %v391 = vld [vmem:[%s349 + $0x69] sm:$0xff]
        %v392 = vld [vmem:[%s349 + $0x79] sm:$0xff]
        %v393 = vld [vmem:[%s349 + $0x81] sm:$0xff]
        %v394 = vld [vmem:[%s349 + $0x91] sm:$0xff]
        %v395 = vld [vmem:[%s349 + $0x99] sm:$0xff]
        %v396 = vld [vmem:[%s349 + $0xa9] sm:$0xff]
        %v397 = vld [vmem:[%s349 + $0xb1] sm:$0xff]
        %v398 = vld [vmem:[%s349 + $0xc1] sm:$0xff]
        %v399 = vld [vmem:[%s349 + $0xc9] sm:$0xff]
        %v400 = vld [vmem:[%s349 + $0xd9] sm:$0xff]
        %v401 = vld [vmem:[%s349 + $0xe1] sm:$0xff]
        %v402 = vld [vmem:[%s349 + $0xf1] sm:$0xff]
        %v403 = vld [vmem:[%s349 + $0xf9] sm:$0xff]
        %v404 = vld [vmem:[%s349 + $0x109] sm:$0xff]
        %v405 = vld [vmem:[%s349 + $0x111] sm:$0xff]
        %v406 = vld [vmem:[%s349 + $0x121] sm:$0xff]
        %v407 = vld [vmem:[%s349 + $0x129] sm:$0xff]
        %v408 = vld [vmem:[%s349 + $0x139] sm:$0xff]
        %v409 = vld [vmem:[%s349 + $0x141] sm:$0xff]
        %v410 = vld [vmem:[%s349 + $0x151] sm:$0xff]
        %v411 = vld [vmem:[%s349 + $0x159] sm:$0xff]
        %v412 = vld [vmem:[%s349 + $0x169] sm:$0xff]
        %v413 = vld [vmem:[%s349 + $0x171] sm:$0xff]
        %v414 = vld [vmem:[%s349 + $0x2] sm:$0xff]
        %v415 = vld [vmem:[%s349 + $0xa] sm:$0xff]
        %v416 = vld [vmem:[%s349 + $0x1a] sm:$0xff]
        %v417 = vld [vmem:[%s349 + $0x22] sm:$0xff]
        %v418 = vld [vmem:[%s349 + $0x32] sm:$0xff]
        %v419 = vld [vmem:[%s349 + $0x3a] sm:$0xff]
        %v420 = vld [vmem:[%s349 + $0x4a] sm:$0xff]
        %v421 = vld [vmem:[%s349 + $0x52] sm:$0xff]
        %v422 = vld [vmem:[%s349 + $0x62] sm:$0xff]
        %v423 = vld [vmem:[%s349 + $0x6a] sm:$0xff]
        %v424 = vld [vmem:[%s349 + $0x7a] sm:$0xff]
        %v425 = vld [vmem:[%s349 + $0x82] sm:$0xff]
        %v426 = vld [vmem:[%s349 + $0x92] sm:$0xff]
        %v427 = vld [vmem:[%s349 + $0x9a] sm:$0xff]
        %v428 = vld [vmem:[%s349 + $0xaa] sm:$0xff]
        %v429 = vld [vmem:[%s349 + $0xb2] sm:$0xff]
        %v430 = vld [vmem:[%s349 + $0xc2] sm:$0xff]
        %v431 = vld [vmem:[%s349 + $0xca] sm:$0xff]
        %v432 = vld [vmem:[%s349 + $0xda] sm:$0xff]
        %v433 = vld [vmem:[%s349 + $0xe2] sm:$0xff]
        %v434 = vld [vmem:[%s349 + $0xf2] sm:$0xff]
        %v435 = vld [vmem:[%s349 + $0xfa] sm:$0xff]
        %v436 = vld [vmem:[%s349 + $0x10a] sm:$0xff]
        %v437 = vld [vmem:[%s349 + $0x112] sm:$0xff]
        %v438 = vld [vmem:[%s349 + $0x122] sm:$0xff]
        %v439 = vld [vmem:[%s349 + $0x12a] sm:$0xff]
        %v440 = vld [vmem:[%s349 + $0x13a] sm:$0xff]
        %v441 = vld [vmem:[%s349 + $0x142] sm:$0xff]
        %v442 = vld [vmem:[%s349 + $0x152] sm:$0xff]
        %v443 = vld [vmem:[%s349 + $0x15a] sm:$0xff]
        %v444 = vld [vmem:[%s349 + $0x16a] sm:$0xff]
        %v445 = vld [vmem:[%s349 + $0x172] sm:$0xff]
        %s446 = scalar_lea.vmem %s244, 48
        %v447 = vld [vmem:[%s446] sm:$0xff]
        %v448 = vld [vmem:[%s446 + $0x8] sm:$0xff]
        %v449 = vld [vmem:[%s446 + $0x18] sm:$0xff]
        %v450 = vld [vmem:[%s446 + $0x20] sm:$0xff]
        %v451 = vld [vmem:[%s446 + $0x30] sm:$0xff]
        %v452 = vld [vmem:[%s446 + $0x38] sm:$0xff]
        %v453 = vld [vmem:[%s446 + $0x48] sm:$0xff]
        %v454 = vld [vmem:[%s446 + $0x50] sm:$0xff]
        %v455 = vld [vmem:[%s446 + $0x60] sm:$0xff]
        %v456 = vld [vmem:[%s446 + $0x68] sm:$0xff]
        %v457 = vld [vmem:[%s446 + $0x78] sm:$0xff]
        %v458 = vld [vmem:[%s446 + $0x80] sm:$0xff]
        %v459 = vld [vmem:[%s446 + $0x90] sm:$0xff]
        %v460 = vld [vmem:[%s446 + $0x98] sm:$0xff]
        %v461 = vld [vmem:[%s446 + $0xa8] sm:$0xff]
        %v462 = vld [vmem:[%s446 + $0xb0] sm:$0xff]
        %v463 = vld [vmem:[%s446 + $0xc0] sm:$0xff]
        %v464 = vld [vmem:[%s446 + $0xc8] sm:$0xff]
        %v465 = vld [vmem:[%s446 + $0xd8] sm:$0xff]
        %v466 = vld [vmem:[%s446 + $0xe0] sm:$0xff]
        %v467 = vld [vmem:[%s446 + $0xf0] sm:$0xff]
        %v468 = vld [vmem:[%s446 + $0xf8] sm:$0xff]
        %v469 = vld [vmem:[%s446 + $0x108] sm:$0xff]
        %v470 = vld [vmem:[%s446 + $0x110] sm:$0xff]
        %v471 = vld [vmem:[%s446 + $0x120] sm:$0xff]
        %v472 = vld [vmem:[%s446 + $0x128] sm:$0xff]
        %v473 = vld [vmem:[%s446 + $0x138] sm:$0xff]
        %v474 = vld [vmem:[%s446 + $0x140] sm:$0xff]
        %v475 = vld [vmem:[%s446 + $0x150] sm:$0xff]
        %v476 = vld [vmem:[%s446 + $0x158] sm:$0xff]
        %v477 = vld [vmem:[%s446 + $0x168] sm:$0xff]
        %v478 = vld [vmem:[%s446 + $0x170] sm:$0xff]
        %v479 = vld [vmem:[%s446 + $0x1] sm:$0xff]
        %v480 = vld [vmem:[%s446 + $0x9] sm:$0xff]
        %v481 = vld [vmem:[%s446 + $0x19] sm:$0xff]
        %v482 = vld [vmem:[%s446 + $0x21] sm:$0xff]
        %v483 = vld [vmem:[%s446 + $0x31] sm:$0xff]
        %v484 = vld [vmem:[%s446 + $0x39] sm:$0xff]
        %v485 = vld [vmem:[%s446 + $0x49] sm:$0xff]
        %v486 = vld [vmem:[%s446 + $0x51] sm:$0xff]
        %v487 = vld [vmem:[%s446 + $0x61] sm:$0xff]
        %v488 = vld [vmem:[%s446 + $0x69] sm:$0xff]
        %v489 = vld [vmem:[%s446 + $0x79] sm:$0xff]
        %v490 = vld [vmem:[%s446 + $0x81] sm:$0xff]
        %v491 = vld [vmem:[%s446 + $0x91] sm:$0xff]
        %v492 = vld [vmem:[%s446 + $0x99] sm:$0xff]
        %v493 = vld [vmem:[%s446 + $0xa9] sm:$0xff]
        %v494 = vld [vmem:[%s446 + $0xb1] sm:$0xff]
        %v495 = vld [vmem:[%s446 + $0xc1] sm:$0xff]
        %v496 = vld [vmem:[%s446 + $0xc9] sm:$0xff]
        %v497 = vld [vmem:[%s446 + $0xd9] sm:$0xff]
        %v498 = vld [vmem:[%s446 + $0xe1] sm:$0xff]
        %v499 = vld [vmem:[%s446 + $0xf1] sm:$0xff]
        %v500 = vld [vmem:[%s446 + $0xf9] sm:$0xff]
        %v501 = vld [vmem:[%s446 + $0x109] sm:$0xff]
        %v502 = vld [vmem:[%s446 + $0x111] sm:$0xff]
        %v503 = vld [vmem:[%s446 + $0x121] sm:$0xff]
        %v504 = vld [vmem:[%s446 + $0x129] sm:$0xff]
        %v505 = vld [vmem:[%s446 + $0x139] sm:$0xff]
        %v506 = vld [vmem:[%s446 + $0x141] sm:$0xff]
        %v507 = vld [vmem:[%s446 + $0x151] sm:$0xff]
        %v508 = vld [vmem:[%s446 + $0x159] sm:$0xff]
        %v509 = vld [vmem:[%s446 + $0x169] sm:$0xff]
        %v510 = vld [vmem:[%s446 + $0x171] sm:$0xff]
        %v511 = vld [vmem:[%s446 + $0x2] sm:$0xff]
        %v512 = vld [vmem:[%s446 + $0xa] sm:$0xff]
        %v513 = vld [vmem:[%s446 + $0x1a] sm:$0xff]
        %v514 = vld [vmem:[%s446 + $0x22] sm:$0xff]
        %v515 = vld [vmem:[%s446 + $0x32] sm:$0xff]
        %v516 = vld [vmem:[%s446 + $0x3a] sm:$0xff]
        %v517 = vld [vmem:[%s446 + $0x4a] sm:$0xff]
        %v518 = vld [vmem:[%s446 + $0x52] sm:$0xff]
        %v519 = vld [vmem:[%s446 + $0x62] sm:$0xff]
        %v520 = vld [vmem:[%s446 + $0x6a] sm:$0xff]
        %v521 = vld [vmem:[%s446 + $0x7a] sm:$0xff]
        %v522 = vld [vmem:[%s446 + $0x82] sm:$0xff]
        %v523 = vld [vmem:[%s446 + $0x92] sm:$0xff]
        %v524 = vld [vmem:[%s446 + $0x9a] sm:$0xff]
        %v525 = vld [vmem:[%s446 + $0xaa] sm:$0xff]
        %v526 = vld [vmem:[%s446 + $0xb2] sm:$0xff]
        %v527 = vld [vmem:[%s446 + $0xc2] sm:$0xff]
        %v528 = vld [vmem:[%s446 + $0xca] sm:$0xff]
        %v529 = vld [vmem:[%s446 + $0xda] sm:$0xff]
        %v530 = vld [vmem:[%s446 + $0xe2] sm:$0xff]
        %v531 = vld [vmem:[%s446 + $0xf2] sm:$0xff]
        %v532 = vld [vmem:[%s446 + $0xfa] sm:$0xff]
        %v533 = vld [vmem:[%s446 + $0x10a] sm:$0xff]
        %v534 = vld [vmem:[%s446 + $0x112] sm:$0xff]
        %v535 = vld [vmem:[%s446 + $0x122] sm:$0xff]
        %v536 = vld [vmem:[%s446 + $0x12a] sm:$0xff]
        %v537 = vld [vmem:[%s446 + $0x13a] sm:$0xff]
        %v538 = vld [vmem:[%s446 + $0x142] sm:$0xff]
        %v539 = vld [vmem:[%s446 + $0x152] sm:$0xff]
        %v540 = vld [vmem:[%s446 + $0x15a] sm:$0xff]
        %v541 = vld [vmem:[%s446 + $0x16a] sm:$0xff]
        %v542 = vld [vmem:[%s446 + $0x172] sm:$0xff]
        %575 = vrot.lane.b32.xlu0 %v285, 4
        %v576 = vpop.permute.xlu0 %575
        %577 = vrot.lane.b32.xlu0 %v286, 4
        %v578 = vpop.permute.xlu0 %577
        %579 = vrot.lane.b32.xlu0 %v287, 4
        %v580 = vpop.permute.xlu0 %579
        %581 = vrot.lane.b32.xlu0 %v288, 4
        %v582 = vpop.permute.xlu0 %581
        %583 = vrot.lane.b32.xlu0 %v289, 4
        %v584 = vpop.permute.xlu0 %583
        %585 = vrot.lane.b32.xlu0 %v290, 4
        %v586 = vpop.permute.xlu0 %585
        %587 = vrot.lane.b32.xlu0 %v291, 4
        %v588 = vpop.permute.xlu0 %587
        %589 = vrot.lane.b32.xlu0 %v292, 4
        %v590 = vpop.permute.xlu0 %589
        %591 = vrot.lane.b32.xlu0 %v293, 4
        %v592 = vpop.permute.xlu0 %591
        %593 = vrot.lane.b32.xlu0 %v294, 4
        %v594 = vpop.permute.xlu0 %593
        %595 = vrot.lane.b32.xlu0 %v295, 4
        %v596 = vpop.permute.xlu0 %595
        %597 = vrot.lane.b32.xlu0 %v296, 4
        %v598 = vpop.permute.xlu0 %597
        %599 = vrot.lane.b32.xlu0 %v297, 4
        %v600 = vpop.permute.xlu0 %599
        %601 = vrot.lane.b32.xlu0 %v298, 4
        %v602 = vpop.permute.xlu0 %601
        %603 = vrot.lane.b32.xlu0 %v299, 4
        %v604 = vpop.permute.xlu0 %603
        %605 = vrot.lane.b32.xlu0 %v300, 4
        %v606 = vpop.permute.xlu0 %605
        %607 = vrot.lane.b32.xlu0 %v301, 4
        %v608 = vpop.permute.xlu0 %607
        %609 = vrot.lane.b32.xlu0 %v302, 4
        %v610 = vpop.permute.xlu0 %609
        %611 = vrot.lane.b32.xlu0 %v303, 4
        %v612 = vpop.permute.xlu0 %611
        %613 = vrot.lane.b32.xlu0 %v304, 4
        %v614 = vpop.permute.xlu0 %613
        %615 = vrot.lane.b32.xlu0 %v305, 4
        %v616 = vpop.permute.xlu0 %615
        %617 = vrot.lane.b32.xlu0 %v306, 4
        %v618 = vpop.permute.xlu0 %617
        %619 = vrot.lane.b32.xlu0 %v307, 4
        %v620 = vpop.permute.xlu0 %619
        %621 = vrot.lane.b32.xlu0 %v308, 4
        %v622 = vpop.permute.xlu0 %621
        %623 = vrot.lane.b32.xlu0 %v309, 4
        %v624 = vpop.permute.xlu0 %623
        %625 = vrot.lane.b32.xlu0 %v310, 4
        %v626 = vpop.permute.xlu0 %625
        %627 = vrot.lane.b32.xlu0 %v311, 4
        %v628 = vpop.permute.xlu0 %627
        %629 = vrot.lane.b32.xlu0 %v312, 4
        %v630 = vpop.permute.xlu0 %629
        %631 = vrot.lane.b32.xlu0 %v313, 4
        %v632 = vpop.permute.xlu0 %631
        %633 = vrot.lane.b32.xlu0 %v314, 4
        %v634 = vpop.permute.xlu0 %633
        %635 = vrot.lane.b32.xlu0 %v315, 4
        %v636 = vpop.permute.xlu0 %635
        %637 = vrot.lane.b32.xlu0 %v316, 4
        %v638 = vpop.permute.xlu0 %637
        %703 = vrot.lane.b32.xlu0 %v317, 8
        %v704 = vpop.permute.xlu0 %703
        %705 = vrot.lane.b32.xlu0 %v318, 8
        %v706 = vpop.permute.xlu0 %705
        %707 = vrot.lane.b32.xlu0 %v319, 8
        %v708 = vpop.permute.xlu0 %707
        %709 = vrot.lane.b32.xlu0 %v320, 8
        %v710 = vpop.permute.xlu0 %709
        %711 = vrot.lane.b32.xlu0 %v321, 8
        %v712 = vpop.permute.xlu0 %711
        %713 = vrot.lane.b32.xlu0 %v322, 8
        %v714 = vpop.permute.xlu0 %713
        %715 = vrot.lane.b32.xlu0 %v323, 8
        %v716 = vpop.permute.xlu0 %715
        %717 = vrot.lane.b32.xlu0 %v324, 8
        %v718 = vpop.permute.xlu0 %717
        %719 = vrot.lane.b32.xlu0 %v325, 8
        %v720 = vpop.permute.xlu0 %719
        %721 = vrot.lane.b32.xlu0 %v326, 8
        %v722 = vpop.permute.xlu0 %721
        %723 = vrot.lane.b32.xlu0 %v327, 8
        %v724 = vpop.permute.xlu0 %723
        %725 = vrot.lane.b32.xlu0 %v328, 8
        %v726 = vpop.permute.xlu0 %725
        %727 = vrot.lane.b32.xlu0 %v329, 8
        %v728 = vpop.permute.xlu0 %727
        %729 = vrot.lane.b32.xlu0 %v330, 8
        %v730 = vpop.permute.xlu0 %729
        %731 = vrot.lane.b32.xlu0 %v331, 8
        %v732 = vpop.permute.xlu0 %731
        %733 = vrot.lane.b32.xlu0 %v332, 8
        %v734 = vpop.permute.xlu0 %733
        %735 = vrot.lane.b32.xlu0 %v333, 8
        %v736 = vpop.permute.xlu0 %735
        %737 = vrot.lane.b32.xlu0 %v334, 8
        %v738 = vpop.permute.xlu0 %737
        %739 = vrot.lane.b32.xlu0 %v335, 8
        %v740 = vpop.permute.xlu0 %739
        %741 = vrot.lane.b32.xlu0 %v336, 8
        %v742 = vpop.permute.xlu0 %741
        %743 = vrot.lane.b32.xlu0 %v337, 8
        %v744 = vpop.permute.xlu0 %743
        %745 = vrot.lane.b32.xlu0 %v338, 8
        %v746 = vpop.permute.xlu0 %745
        %747 = vrot.lane.b32.xlu0 %v339, 8
        %v748 = vpop.permute.xlu0 %747
        %749 = vrot.lane.b32.xlu0 %v340, 8
        %v750 = vpop.permute.xlu0 %749
        %751 = vrot.lane.b32.xlu0 %v341, 8
        %v752 = vpop.permute.xlu0 %751
        %753 = vrot.lane.b32.xlu0 %v342, 8
        %v754 = vpop.permute.xlu0 %753
        %755 = vrot.lane.b32.xlu0 %v343, 8
        %v756 = vpop.permute.xlu0 %755
        %757 = vrot.lane.b32.xlu0 %v344, 8
        %v758 = vpop.permute.xlu0 %757
        %759 = vrot.lane.b32.xlu0 %v345, 8
        %v760 = vpop.permute.xlu0 %759
        %761 = vrot.lane.b32.xlu0 %v346, 8
        %v762 = vpop.permute.xlu0 %761
        %763 = vrot.lane.b32.xlu0 %v347, 8
        %v764 = vpop.permute.xlu0 %763
        %765 = vrot.lane.b32.xlu0 %v348, 8
        %v766 = vpop.permute.xlu0 %765
        %831 = vrot.lane.b32.xlu0 %v350, 12
        %v832 = vpop.permute.xlu0 %831
        %833 = vrot.lane.b32.xlu0 %v351, 12
        %v834 = vpop.permute.xlu0 %833
        %835 = vrot.lane.b32.xlu0 %v352, 12
        %v836 = vpop.permute.xlu0 %835
        %837 = vrot.lane.b32.xlu0 %v353, 12
        %v838 = vpop.permute.xlu0 %837
        %839 = vrot.lane.b32.xlu0 %v354, 12
        %v840 = vpop.permute.xlu0 %839
        %841 = vrot.lane.b32.xlu0 %v355, 12
        %v842 = vpop.permute.xlu0 %841
        %843 = vrot.lane.b32.xlu0 %v356, 12
        %v844 = vpop.permute.xlu0 %843
        %845 = vrot.lane.b32.xlu0 %v357, 12
        %v846 = vpop.permute.xlu0 %845
        %847 = vrot.lane.b32.xlu0 %v358, 12
        %v848 = vpop.permute.xlu0 %847
        %849 = vrot.lane.b32.xlu0 %v359, 12
        %v850 = vpop.permute.xlu0 %849
        %851 = vrot.lane.b32.xlu0 %v360, 12
        %v852 = vpop.permute.xlu0 %851
        %853 = vrot.lane.b32.xlu0 %v361, 12
        %v854 = vpop.permute.xlu0 %853
        %855 = vrot.lane.b32.xlu0 %v362, 12
        %v856 = vpop.permute.xlu0 %855
        %857 = vrot.lane.b32.xlu0 %v363, 12
        %v858 = vpop.permute.xlu0 %857
        %859 = vrot.lane.b32.xlu0 %v364, 12
        %v860 = vpop.permute.xlu0 %859
        %861 = vrot.lane.b32.xlu0 %v365, 12
        %v862 = vpop.permute.xlu0 %861
        %863 = vrot.lane.b32.xlu0 %v366, 12
        %v864 = vpop.permute.xlu0 %863
        %865 = vrot.lane.b32.xlu0 %v367, 12
        %v866 = vpop.permute.xlu0 %865
        %867 = vrot.lane.b32.xlu0 %v368, 12
        %v868 = vpop.permute.xlu0 %867
        %869 = vrot.lane.b32.xlu0 %v369, 12
        %v870 = vpop.permute.xlu0 %869
        %871 = vrot.lane.b32.xlu0 %v370, 12
        %v872 = vpop.permute.xlu0 %871
        %873 = vrot.lane.b32.xlu0 %v371, 12
        %v874 = vpop.permute.xlu0 %873
        %875 = vrot.lane.b32.xlu0 %v372, 12
        %v876 = vpop.permute.xlu0 %875
        %877 = vrot.lane.b32.xlu0 %v373, 12
        %v878 = vpop.permute.xlu0 %877
        %879 = vrot.lane.b32.xlu0 %v374, 12
        %v880 = vpop.permute.xlu0 %879
        %881 = vrot.lane.b32.xlu0 %v375, 12
        %v882 = vpop.permute.xlu0 %881
        %883 = vrot.lane.b32.xlu0 %v376, 12
        %v884 = vpop.permute.xlu0 %883
        %885 = vrot.lane.b32.xlu0 %v377, 12
        %v886 = vpop.permute.xlu0 %885
        %887 = vrot.lane.b32.xlu0 %v378, 12
        %v888 = vpop.permute.xlu0 %887
        %889 = vrot.lane.b32.xlu0 %v379, 12
        %v890 = vpop.permute.xlu0 %889
        %891 = vrot.lane.b32.xlu0 %v380, 12
        %v892 = vpop.permute.xlu0 %891
        %893 = vrot.lane.b32.xlu0 %v381, 12
        %v894 = vpop.permute.xlu0 %893
        %959 = vrot.lane.b32.xlu0 %v382, 16
        %v960 = vpop.permute.xlu0 %959
        %961 = vrot.lane.b32.xlu0 %v383, 16
        %v962 = vpop.permute.xlu0 %961
        %963 = vrot.lane.b32.xlu0 %v384, 16
        %v964 = vpop.permute.xlu0 %963
        %965 = vrot.lane.b32.xlu0 %v385, 16
        %v966 = vpop.permute.xlu0 %965
        %967 = vrot.lane.b32.xlu0 %v386, 16
        %v968 = vpop.permute.xlu0 %967
        %969 = vrot.lane.b32.xlu0 %v387, 16
        %v970 = vpop.permute.xlu0 %969
        %971 = vrot.lane.b32.xlu0 %v388, 16
        %v972 = vpop.permute.xlu0 %971
        %973 = vrot.lane.b32.xlu0 %v389, 16
        %v974 = vpop.permute.xlu0 %973
        %975 = vrot.lane.b32.xlu0 %v390, 16
        %v976 = vpop.permute.xlu0 %975
        %977 = vrot.lane.b32.xlu0 %v391, 16
        %v978 = vpop.permute.xlu0 %977
        %979 = vrot.lane.b32.xlu0 %v392, 16
        %v980 = vpop.permute.xlu0 %979
        %981 = vrot.lane.b32.xlu0 %v393, 16
        %v982 = vpop.permute.xlu0 %981
        %983 = vrot.lane.b32.xlu0 %v394, 16
        %v984 = vpop.permute.xlu0 %983
        %985 = vrot.lane.b32.xlu0 %v395, 16
        %v986 = vpop.permute.xlu0 %985
        %987 = vrot.lane.b32.xlu0 %v396, 16
        %v988 = vpop.permute.xlu0 %987
        %989 = vrot.lane.b32.xlu0 %v397, 16
        %v990 = vpop.permute.xlu0 %989
        %991 = vrot.lane.b32.xlu0 %v398, 16
        %v992 = vpop.permute.xlu0 %991
        %993 = vrot.lane.b32.xlu0 %v399, 16
        %v994 = vpop.permute.xlu0 %993
        %995 = vrot.lane.b32.xlu0 %v400, 16
        %v996 = vpop.permute.xlu0 %995
        %997 = vrot.lane.b32.xlu0 %v401, 16
        %v998 = vpop.permute.xlu0 %997
        %999 = vrot.lane.b32.xlu0 %v402, 16
        %v1000 = vpop.permute.xlu0 %999
        %1001 = vrot.lane.b32.xlu0 %v403, 16
        %v1002 = vpop.permute.xlu0 %1001
        %1003 = vrot.lane.b32.xlu0 %v404, 16
        %v1004 = vpop.permute.xlu0 %1003
        %1005 = vrot.lane.b32.xlu0 %v405, 16
        %v1006 = vpop.permute.xlu0 %1005
        %1007 = vrot.lane.b32.xlu0 %v406, 16
        %v1008 = vpop.permute.xlu0 %1007
        %1009 = vrot.lane.b32.xlu0 %v407, 16
        %v1010 = vpop.permute.xlu0 %1009
        %1011 = vrot.lane.b32.xlu0 %v408, 16
        %v1012 = vpop.permute.xlu0 %1011
        %1013 = vrot.lane.b32.xlu0 %v409, 16
        %v1014 = vpop.permute.xlu0 %1013
        %1015 = vrot.lane.b32.xlu0 %v410, 16
        %v1016 = vpop.permute.xlu0 %1015
        %1017 = vrot.lane.b32.xlu0 %v411, 16
        %v1018 = vpop.permute.xlu0 %1017
        %1019 = vrot.lane.b32.xlu0 %v412, 16
        %v1020 = vpop.permute.xlu0 %1019
        %1021 = vrot.lane.b32.xlu0 %v413, 16
        %v1022 = vpop.permute.xlu0 %1021
        %1087 = vrot.lane.b32.xlu0 %v414, 20
        %v1088 = vpop.permute.xlu0 %1087
        %1089 = vrot.lane.b32.xlu0 %v415, 20
        %v1090 = vpop.permute.xlu0 %1089
        %1091 = vrot.lane.b32.xlu0 %v416, 20
        %v1092 = vpop.permute.xlu0 %1091
        %1093 = vrot.lane.b32.xlu0 %v417, 20
        %v1094 = vpop.permute.xlu0 %1093
        %1095 = vrot.lane.b32.xlu0 %v418, 20
        %v1096 = vpop.permute.xlu0 %1095
        %1097 = vrot.lane.b32.xlu0 %v419, 20
        %v1098 = vpop.permute.xlu0 %1097
        %1099 = vrot.lane.b32.xlu0 %v420, 20
        %v1100 = vpop.permute.xlu0 %1099
        %1101 = vrot.lane.b32.xlu0 %v421, 20
        %v1102 = vpop.permute.xlu0 %1101
        %1103 = vrot.lane.b32.xlu0 %v422, 20
        %v1104 = vpop.permute.xlu0 %1103
        %1105 = vrot.lane.b32.xlu0 %v423, 20
        %v1106 = vpop.permute.xlu0 %1105
        %1107 = vrot.lane.b32.xlu0 %v424, 20
        %v1108 = vpop.permute.xlu0 %1107
        %1109 = vrot.lane.b32.xlu0 %v425, 20
        %v1110 = vpop.permute.xlu0 %1109
        %1111 = vrot.lane.b32.xlu0 %v426, 20
        %v1112 = vpop.permute.xlu0 %1111
        %1113 = vrot.lane.b32.xlu0 %v427, 20
        %v1114 = vpop.permute.xlu0 %1113
        %1115 = vrot.lane.b32.xlu0 %v428, 20
        %v1116 = vpop.permute.xlu0 %1115
        %1117 = vrot.lane.b32.xlu0 %v429, 20
        %v1118 = vpop.permute.xlu0 %1117
        %1119 = vrot.lane.b32.xlu0 %v430, 20
        %v1120 = vpop.permute.xlu0 %1119
        %1121 = vrot.lane.b32.xlu0 %v431, 20
        %v1122 = vpop.permute.xlu0 %1121
        %1123 = vrot.lane.b32.xlu0 %v432, 20
        %v1124 = vpop.permute.xlu0 %1123
        %1125 = vrot.lane.b32.xlu0 %v433, 20
        %v1126 = vpop.permute.xlu0 %1125
        %1127 = vrot.lane.b32.xlu0 %v434, 20
        %v1128 = vpop.permute.xlu0 %1127
        %1129 = vrot.lane.b32.xlu0 %v435, 20
        %v1130 = vpop.permute.xlu0 %1129
        %1131 = vrot.lane.b32.xlu0 %v436, 20
        %v1132 = vpop.permute.xlu0 %1131
        %1133 = vrot.lane.b32.xlu0 %v437, 20
        %v1134 = vpop.permute.xlu0 %1133
        %1135 = vrot.lane.b32.xlu0 %v438, 20
        %v1136 = vpop.permute.xlu0 %1135
        %1137 = vrot.lane.b32.xlu0 %v439, 20
        %v1138 = vpop.permute.xlu0 %1137
        %1139 = vrot.lane.b32.xlu0 %v440, 20
        %v1140 = vpop.permute.xlu0 %1139
        %1141 = vrot.lane.b32.xlu0 %v441, 20
        %v1142 = vpop.permute.xlu0 %1141
        %1143 = vrot.lane.b32.xlu0 %v442, 20
        %v1144 = vpop.permute.xlu0 %1143
        %1145 = vrot.lane.b32.xlu0 %v443, 20
        %v1146 = vpop.permute.xlu0 %1145
        %1147 = vrot.lane.b32.xlu0 %v444, 20
        %v1148 = vpop.permute.xlu0 %1147
        %1149 = vrot.lane.b32.xlu0 %v445, 20
        %v1150 = vpop.permute.xlu0 %1149
        %1215 = vrot.lane.b32.xlu0 %v447, 24
        %v1216 = vpop.permute.xlu0 %1215
        %1217 = vrot.lane.b32.xlu0 %v448, 24
        %v1218 = vpop.permute.xlu0 %1217
        %1219 = vrot.lane.b32.xlu0 %v449, 24
        %v1220 = vpop.permute.xlu0 %1219
        %1221 = vrot.lane.b32.xlu0 %v450, 24
        %v1222 = vpop.permute.xlu0 %1221
        %1223 = vrot.lane.b32.xlu0 %v451, 24
        %v1224 = vpop.permute.xlu0 %1223
        %1225 = vrot.lane.b32.xlu0 %v452, 24
        %v1226 = vpop.permute.xlu0 %1225
        %1227 = vrot.lane.b32.xlu0 %v453, 24
        %v1228 = vpop.permute.xlu0 %1227
        %1229 = vrot.lane.b32.xlu0 %v454, 24
        %v1230 = vpop.permute.xlu0 %1229
        %1231 = vrot.lane.b32.xlu0 %v455, 24
        %v1232 = vpop.permute.xlu0 %1231
        %1233 = vrot.lane.b32.xlu0 %v456, 24
        %v1234 = vpop.permute.xlu0 %1233
        %1235 = vrot.lane.b32.xlu0 %v457, 24
        %v1236 = vpop.permute.xlu0 %1235
        %1237 = vrot.lane.b32.xlu0 %v458, 24
        %v1238 = vpop.permute.xlu0 %1237
        %1239 = vrot.lane.b32.xlu0 %v459, 24
        %v1240 = vpop.permute.xlu0 %1239
        %1241 = vrot.lane.b32.xlu0 %v460, 24
        %v1242 = vpop.permute.xlu0 %1241
        %1243 = vrot.lane.b32.xlu0 %v461, 24
        %v1244 = vpop.permute.xlu0 %1243
        %1245 = vrot.lane.b32.xlu0 %v462, 24
        %v1246 = vpop.permute.xlu0 %1245
        %1247 = vrot.lane.b32.xlu0 %v463, 24
        %v1248 = vpop.permute.xlu0 %1247
        %1249 = vrot.lane.b32.xlu0 %v464, 24
        %v1250 = vpop.permute.xlu0 %1249
        %1251 = vrot.lane.b32.xlu0 %v465, 24
        %v1252 = vpop.permute.xlu0 %1251
        %1253 = vrot.lane.b32.xlu0 %v466, 24
        %v1254 = vpop.permute.xlu0 %1253
        %1255 = vrot.lane.b32.xlu0 %v467, 24
        %v1256 = vpop.permute.xlu0 %1255
        %1257 = vrot.lane.b32.xlu0 %v468, 24
        %v1258 = vpop.permute.xlu0 %1257
        %1259 = vrot.lane.b32.xlu0 %v469, 24
        %v1260 = vpop.permute.xlu0 %1259
        %1261 = vrot.lane.b32.xlu0 %v470, 24
        %v1262 = vpop.permute.xlu0 %1261
        %1263 = vrot.lane.b32.xlu0 %v471, 24
        %v1264 = vpop.permute.xlu0 %1263
        %1265 = vrot.lane.b32.xlu0 %v472, 24
        %v1266 = vpop.permute.xlu0 %1265
        %1267 = vrot.lane.b32.xlu0 %v473, 24
        %v1268 = vpop.permute.xlu0 %1267
        %1269 = vrot.lane.b32.xlu0 %v474, 24
        %v1270 = vpop.permute.xlu0 %1269
        %1271 = vrot.lane.b32.xlu0 %v475, 24
        %v1272 = vpop.permute.xlu0 %1271
        %1273 = vrot.lane.b32.xlu0 %v476, 24
        %v1274 = vpop.permute.xlu0 %1273
        %1275 = vrot.lane.b32.xlu0 %v477, 24
        %v1276 = vpop.permute.xlu0 %1275
        %1277 = vrot.lane.b32.xlu0 %v478, 24
        %v1278 = vpop.permute.xlu0 %1277
        %1343 = vrot.lane.b32.xlu0 %v479, 28
        %v1344 = vpop.permute.xlu0 %1343
        %1345 = vrot.lane.b32.xlu0 %v480, 28
        %v1346 = vpop.permute.xlu0 %1345
        %1347 = vrot.lane.b32.xlu0 %v481, 28
        %v1348 = vpop.permute.xlu0 %1347
        %1349 = vrot.lane.b32.xlu0 %v482, 28
        %v1350 = vpop.permute.xlu0 %1349
        %1351 = vrot.lane.b32.xlu0 %v483, 28
        %v1352 = vpop.permute.xlu0 %1351
        %1353 = vrot.lane.b32.xlu0 %v484, 28
        %v1354 = vpop.permute.xlu0 %1353
        %1355 = vrot.lane.b32.xlu0 %v485, 28
        %v1356 = vpop.permute.xlu0 %1355
        %1357 = vrot.lane.b32.xlu0 %v486, 28
        %v1358 = vpop.permute.xlu0 %1357
        %1359 = vrot.lane.b32.xlu0 %v487, 28
        %v1360 = vpop.permute.xlu0 %1359
        %1361 = vrot.lane.b32.xlu0 %v488, 28
        %v1362 = vpop.permute.xlu0 %1361
        %1363 = vrot.lane.b32.xlu0 %v489, 28
        %v1364 = vpop.permute.xlu0 %1363
        %1365 = vrot.lane.b32.xlu0 %v490, 28
        %v1366 = vpop.permute.xlu0 %1365
        %1367 = vrot.lane.b32.xlu0 %v491, 28
        %v1368 = vpop.permute.xlu0 %1367
        %1369 = vrot.lane.b32.xlu0 %v492, 28
        %v1370 = vpop.permute.xlu0 %1369
        %1371 = vrot.lane.b32.xlu0 %v493, 28
        %v1372 = vpop.permute.xlu0 %1371
        %1373 = vrot.lane.b32.xlu0 %v494, 28
        %v1374 = vpop.permute.xlu0 %1373
        %1375 = vrot.lane.b32.xlu0 %v495, 28
        %v1376 = vpop.permute.xlu0 %1375
        %1377 = vrot.lane.b32.xlu0 %v496, 28
        %v1378 = vpop.permute.xlu0 %1377
        %1379 = vrot.lane.b32.xlu0 %v497, 28
        %v1380 = vpop.permute.xlu0 %1379
        %1381 = vrot.lane.b32.xlu0 %v498, 28
        %v1382 = vpop.permute.xlu0 %1381
        %1383 = vrot.lane.b32.xlu0 %v499, 28
        %v1384 = vpop.permute.xlu0 %1383
        %1385 = vrot.lane.b32.xlu0 %v500, 28
        %v1386 = vpop.permute.xlu0 %1385
        %1387 = vrot.lane.b32.xlu0 %v501, 28
        %v1388 = vpop.permute.xlu0 %1387
        %1389 = vrot.lane.b32.xlu0 %v502, 28
        %v1390 = vpop.permute.xlu0 %1389
        %1391 = vrot.lane.b32.xlu0 %v503, 28
        %v1392 = vpop.permute.xlu0 %1391
        %1393 = vrot.lane.b32.xlu0 %v504, 28
        %v1394 = vpop.permute.xlu0 %1393
        %1395 = vrot.lane.b32.xlu0 %v505, 28
        %v1396 = vpop.permute.xlu0 %1395
        %1397 = vrot.lane.b32.xlu0 %v506, 28
        %v1398 = vpop.permute.xlu0 %1397
        %1399 = vrot.lane.b32.xlu0 %v507, 28
        %v1400 = vpop.permute.xlu0 %1399
        %1401 = vrot.lane.b32.xlu0 %v508, 28
        %v1402 = vpop.permute.xlu0 %1401
        %1403 = vrot.lane.b32.xlu0 %v509, 28
        %v1404 = vpop.permute.xlu0 %1403
        %1405 = vrot.lane.b32.xlu0 %v510, 28
        %v1406 = vpop.permute.xlu0 %1405
        %1471 = vrot.lane.b32.xlu0 %v511, 32
        %v1472 = vpop.permute.xlu0 %1471
        %1473 = vrot.lane.b32.xlu0 %v512, 32
        %v1474 = vpop.permute.xlu0 %1473
        %1475 = vrot.lane.b32.xlu0 %v513, 32
        %v1476 = vpop.permute.xlu0 %1475
        %1477 = vrot.lane.b32.xlu0 %v514, 32
        %v1478 = vpop.permute.xlu0 %1477
        %1479 = vrot.lane.b32.xlu0 %v515, 32
        %v1480 = vpop.permute.xlu0 %1479
        %1481 = vrot.lane.b32.xlu0 %v516, 32
        %v1482 = vpop.permute.xlu0 %1481
        %1483 = vrot.lane.b32.xlu0 %v517, 32
        %v1484 = vpop.permute.xlu0 %1483
        %1485 = vrot.lane.b32.xlu0 %v518, 32
        %v1486 = vpop.permute.xlu0 %1485
        %1487 = vrot.lane.b32.xlu0 %v519, 32
        %v1488 = vpop.permute.xlu0 %1487
        %1489 = vrot.lane.b32.xlu0 %v520, 32
        %v1490 = vpop.permute.xlu0 %1489
        %1491 = vrot.lane.b32.xlu0 %v521, 32
        %v1492 = vpop.permute.xlu0 %1491
        %1493 = vrot.lane.b32.xlu0 %v522, 32
        %v1494 = vpop.permute.xlu0 %1493
        %1495 = vrot.lane.b32.xlu0 %v523, 32
        %v1496 = vpop.permute.xlu0 %1495
        %1497 = vrot.lane.b32.xlu0 %v524, 32
        %v1498 = vpop.permute.xlu0 %1497
        %1499 = vrot.lane.b32.xlu0 %v525, 32
        %v1500 = vpop.permute.xlu0 %1499
        %1501 = vrot.lane.b32.xlu0 %v526, 32
        %v1502 = vpop.permute.xlu0 %1501
        %1503 = vrot.lane.b32.xlu0 %v527, 32
        %v1504 = vpop.permute.xlu0 %1503
        %1505 = vrot.lane.b32.xlu0 %v528, 32
        %v1506 = vpop.permute.xlu0 %1505
        %1507 = vrot.lane.b32.xlu0 %v529, 32
        %v1508 = vpop.permute.xlu0 %1507
        %1509 = vrot.lane.b32.xlu0 %v530, 32
        %v1510 = vpop.permute.xlu0 %1509
        %1511 = vrot.lane.b32.xlu0 %v531, 32
        %v1512 = vpop.permute.xlu0 %1511
        %1513 = vrot.lane.b32.xlu0 %v532, 32
        %v1514 = vpop.permute.xlu0 %1513
        %1515 = vrot.lane.b32.xlu0 %v533, 32
        %v1516 = vpop.permute.xlu0 %1515
        %1517 = vrot.lane.b32.xlu0 %v534, 32
        %v1518 = vpop.permute.xlu0 %1517
        %1519 = vrot.lane.b32.xlu0 %v535, 32
        %v1520 = vpop.permute.xlu0 %1519
        %1521 = vrot.lane.b32.xlu0 %v536, 32
        %v1522 = vpop.permute.xlu0 %1521
        %1523 = vrot.lane.b32.xlu0 %v537, 32
        %v1524 = vpop.permute.xlu0 %1523
        %1525 = vrot.lane.b32.xlu0 %v538, 32
        %v1526 = vpop.permute.xlu0 %1525
        %1527 = vrot.lane.b32.xlu0 %v539, 32
        %v1528 = vpop.permute.xlu0 %1527
        %1529 = vrot.lane.b32.xlu0 %v540, 32
        %v1530 = vpop.permute.xlu0 %1529
        %1531 = vrot.lane.b32.xlu0 %v541, 32
        %v1532 = vpop.permute.xlu0 %1531
        %1533 = vrot.lane.b32.xlu0 %v542, 32
        %v1534 = vpop.permute.xlu0 %1533
        %vm1567 = vcmask 31744
        %v1568 = vsel %vm1567, %v253, %v576
        %v1569 = vsel %vm1567, %v254, %v578
        %v1570 = vsel %vm1567, %v255, %v580
        %v1571 = vsel %vm1567, %v256, %v582
        %v1572 = vsel %vm1567, %v257, %v584
        %v1573 = vsel %vm1567, %v258, %v586
        %v1574 = vsel %vm1567, %v259, %v588
        %v1575 = vsel %vm1567, %v260, %v590
        %v1576 = vsel %vm1567, %v261, %v592
        %v1577 = vsel %vm1567, %v262, %v594
        %v1578 = vsel %vm1567, %v263, %v596
        %v1579 = vsel %vm1567, %v264, %v598
        %v1580 = vsel %vm1567, %v265, %v600
        %v1581 = vsel %vm1567, %v266, %v602
        %v1582 = vsel %vm1567, %v267, %v604
        %v1583 = vsel %vm1567, %v268, %v606
        %v1584 = vsel %vm1567, %v269, %v608
        %v1585 = vsel %vm1567, %v270, %v610
        %v1586 = vsel %vm1567, %v271, %v612
        %v1587 = vsel %vm1567, %v272, %v614
        %v1588 = vsel %vm1567, %v273, %v616
        %v1589 = vsel %vm1567, %v274, %v618
        %v1590 = vsel %vm1567, %v275, %v620
        %v1591 = vsel %vm1567, %v276, %v622
        %v1592 = vsel %vm1567, %v277, %v624
        %v1593 = vsel %vm1567, %v278, %v626
        %v1594 = vsel %vm1567, %v279, %v628
        %v1595 = vsel %vm1567, %v280, %v630
        %v1596 = vsel %vm1567, %v281, %v632
        %v1597 = vsel %vm1567, %v282, %v634
        %v1598 = vsel %vm1567, %v283, %v636
        %v1599 = vsel %vm1567, %v284, %v638
        %vm1600 = vcmask 64512
        %v1601 = vsel %vm1600, %v1568, %v704
        %v1602 = vsel %vm1600, %v1569, %v706
        %v1603 = vsel %vm1600, %v1570, %v708
        %v1604 = vsel %vm1600, %v1571, %v710
        %v1605 = vsel %vm1600, %v1572, %v712
        %v1606 = vsel %vm1600, %v1573, %v714
        %v1607 = vsel %vm1600, %v1574, %v716
        %v1608 = vsel %vm1600, %v1575, %v718
        %v1609 = vsel %vm1600, %v1576, %v720
        %v1610 = vsel %vm1600, %v1577, %v722
        %v1611 = vsel %vm1600, %v1578, %v724
        %v1612 = vsel %vm1600, %v1579, %v726
        %v1613 = vsel %vm1600, %v1580, %v728
        %v1614 = vsel %vm1600, %v1581, %v730
        %v1615 = vsel %vm1600, %v1582, %v732
        %v1616 = vsel %vm1600, %v1583, %v734
        %v1617 = vsel %vm1600, %v1584, %v736
        %v1618 = vsel %vm1600, %v1585, %v738
        %v1619 = vsel %vm1600, %v1586, %v740
        %v1620 = vsel %vm1600, %v1587, %v742
        %v1621 = vsel %vm1600, %v1588, %v744
        %v1622 = vsel %vm1600, %v1589, %v746
        %v1623 = vsel %vm1600, %v1590, %v748
        %v1624 = vsel %vm1600, %v1591, %v750
        %v1625 = vsel %vm1600, %v1592, %v752
        %v1626 = vsel %vm1600, %v1593, %v754
        %v1627 = vsel %vm1600, %v1594, %v756
        %v1628 = vsel %vm1600, %v1595, %v758
        %v1629 = vsel %vm1600, %v1596, %v760
        %v1630 = vsel %vm1600, %v1597, %v762
        %v1631 = vsel %vm1600, %v1598, %v764
        %v1632 = vsel %vm1600, %v1599, %v766
        %vm1633 = vcmask 97280
        %v1634 = vsel %vm1633, %v1601, %v832
        %v1635 = vsel %vm1633, %v1602, %v834
        %v1636 = vsel %vm1633, %v1603, %v836
        %v1637 = vsel %vm1633, %v1604, %v838
        %v1638 = vsel %vm1633, %v1605, %v840
        %v1639 = vsel %vm1633, %v1606, %v842
        %v1640 = vsel %vm1633, %v1607, %v844
        %v1641 = vsel %vm1633, %v1608, %v846
        %v1642 = vsel %vm1633, %v1609, %v848
        %v1643 = vsel %vm1633, %v1610, %v850
        %v1644 = vsel %vm1633, %v1611, %v852
        %v1645 = vsel %vm1633, %v1612, %v854
        %v1646 = vsel %vm1633, %v1613, %v856
        %v1647 = vsel %vm1633, %v1614, %v858
        %v1648 = vsel %vm1633, %v1615, %v860
        %v1649 = vsel %vm1633, %v1616, %v862
        %v1650 = vsel %vm1633, %v1617, %v864
        %v1651 = vsel %vm1633, %v1618, %v866
        %v1652 = vsel %vm1633, %v1619, %v868
        %v1653 = vsel %vm1633, %v1620, %v870
        %v1654 = vsel %vm1633, %v1621, %v872
        %v1655 = vsel %vm1633, %v1622, %v874
        %v1656 = vsel %vm1633, %v1623, %v876
        %v1657 = vsel %vm1633, %v1624, %v878
        %v1658 = vsel %vm1633, %v1625, %v880
        %v1659 = vsel %vm1633, %v1626, %v882
        %v1660 = vsel %vm1633, %v1627, %v884
        %v1661 = vsel %vm1633, %v1628, %v886
        %v1662 = vsel %vm1633, %v1629, %v888
        %v1663 = vsel %vm1633, %v1630, %v890
        %v1664 = vsel %vm1633, %v1631, %v892
        %v1665 = vsel %vm1633, %v1632, %v894
        %vm1666 = vcmask 130048
        %v1667 = vsel %vm1666, %v1634, %v960
        %v1668 = vsel %vm1666, %v1635, %v962
        %v1669 = vsel %vm1666, %v1636, %v964
        %v1670 = vsel %vm1666, %v1637, %v966
        %v1671 = vsel %vm1666, %v1638, %v968
        %v1672 = vsel %vm1666, %v1639, %v970
        %v1673 = vsel %vm1666, %v1640, %v972
        %v1674 = vsel %vm1666, %v1641, %v974
        %v1675 = vsel %vm1666, %v1642, %v976
        %v1676 = vsel %vm1666, %v1643, %v978
        %v1677 = vsel %vm1666, %v1644, %v980
        %v1678 = vsel %vm1666, %v1645, %v982
        %v1679 = vsel %vm1666, %v1646, %v984
        %v1680 = vsel %vm1666, %v1647, %v986
        %v1681 = vsel %vm1666, %v1648, %v988
        %v1682 = vsel %vm1666, %v1649, %v990
        %v1683 = vsel %vm1666, %v1650, %v992
        %v1684 = vsel %vm1666, %v1651, %v994
        %v1685 = vsel %vm1666, %v1652, %v996
        %v1686 = vsel %vm1666, %v1653, %v998
        %v1687 = vsel %vm1666, %v1654, %v1000
        %v1688 = vsel %vm1666, %v1655, %v1002
        %v1689 = vsel %vm1666, %v1656, %v1004
        %v1690 = vsel %vm1666, %v1657, %v1006
        %v1691 = vsel %vm1666, %v1658, %v1008
        %v1692 = vsel %vm1666, %v1659, %v1010
        %v1693 = vsel %vm1666, %v1660, %v1012
        %v1694 = vsel %vm1666, %v1661, %v1014
        %v1695 = vsel %vm1666, %v1662, %v1016
        %v1696 = vsel %vm1666, %v1663, %v1018
        %v1697 = vsel %vm1666, %v1664, %v1020
        %v1698 = vsel %vm1666, %v1665, %v1022
        %vm1699 = vcmask 162816
        %v1700 = vsel %vm1699, %v1667, %v1088
        %v1701 = vsel %vm1699, %v1668, %v1090
        %v1702 = vsel %vm1699, %v1669, %v1092
        %v1703 = vsel %vm1699, %v1670, %v1094
        %v1704 = vsel %vm1699, %v1671, %v1096
        %v1705 = vsel %vm1699, %v1672, %v1098
        %v1706 = vsel %vm1699, %v1673, %v1100
        %v1707 = vsel %vm1699, %v1674, %v1102
        %v1708 = vsel %vm1699, %v1675, %v1104
        %v1709 = vsel %vm1699, %v1676, %v1106
        %v1710 = vsel %vm1699, %v1677, %v1108
        %v1711 = vsel %vm1699, %v1678, %v1110
        %v1712 = vsel %vm1699, %v1679, %v1112
        %v1713 = vsel %vm1699, %v1680, %v1114
        %v1714 = vsel %vm1699, %v1681, %v1116
        %v1715 = vsel %vm1699, %v1682, %v1118
        %v1716 = vsel %vm1699, %v1683, %v1120
        %v1717 = vsel %vm1699, %v1684, %v1122
        %v1718 = vsel %vm1699, %v1685, %v1124
        %v1719 = vsel %vm1699, %v1686, %v1126
        %v1720 = vsel %vm1699, %v1687, %v1128
        %v1721 = vsel %vm1699, %v1688, %v1130
        %v1722 = vsel %vm1699, %v1689, %v1132
        %v1723 = vsel %vm1699, %v1690, %v1134
        %v1724 = vsel %vm1699, %v1691, %v1136
        %v1725 = vsel %vm1699, %v1692, %v1138
        %v1726 = vsel %vm1699, %v1693, %v1140
        %v1727 = vsel %vm1699, %v1694, %v1142
        %v1728 = vsel %vm1699, %v1695, %v1144
        %v1729 = vsel %vm1699, %v1696, %v1146
        %v1730 = vsel %vm1699, %v1697, %v1148
        %v1731 = vsel %vm1699, %v1698, %v1150
        %vm1732 = vcmask 195584
        %v1733 = vsel %vm1732, %v1700, %v1216
        %v1734 = vsel %vm1732, %v1701, %v1218
        %v1735 = vsel %vm1732, %v1702, %v1220
        %v1736 = vsel %vm1732, %v1703, %v1222
        %v1737 = vsel %vm1732, %v1704, %v1224
        %v1738 = vsel %vm1732, %v1705, %v1226
        %v1739 = vsel %vm1732, %v1706, %v1228
        %v1740 = vsel %vm1732, %v1707, %v1230
        %v1741 = vsel %vm1732, %v1708, %v1232
        %v1742 = vsel %vm1732, %v1709, %v1234
        %v1743 = vsel %vm1732, %v1710, %v1236
        %v1744 = vsel %vm1732, %v1711, %v1238
        %v1745 = vsel %vm1732, %v1712, %v1240
        %v1746 = vsel %vm1732, %v1713, %v1242
        %v1747 = vsel %vm1732, %v1714, %v1244
        %v1748 = vsel %vm1732, %v1715, %v1246
        %v1749 = vsel %vm1732, %v1716, %v1248
        %v1750 = vsel %vm1732, %v1717, %v1250
        %v1751 = vsel %vm1732, %v1718, %v1252
        %v1752 = vsel %vm1732, %v1719, %v1254
        %v1753 = vsel %vm1732, %v1720, %v1256
        %v1754 = vsel %vm1732, %v1721, %v1258
        %v1755 = vsel %vm1732, %v1722, %v1260
        %v1756 = vsel %vm1732, %v1723, %v1262
        %v1757 = vsel %vm1732, %v1724, %v1264
        %v1758 = vsel %vm1732, %v1725, %v1266
        %v1759 = vsel %vm1732, %v1726, %v1268
        %v1760 = vsel %vm1732, %v1727, %v1270
        %v1761 = vsel %vm1732, %v1728, %v1272
        %v1762 = vsel %vm1732, %v1729, %v1274
        %v1763 = vsel %vm1732, %v1730, %v1276
        %v1764 = vsel %vm1732, %v1731, %v1278
        %vm1765 = vcmask 228352
        %v1766 = vsel %vm1765, %v1733, %v1344
        %v1767 = vsel %vm1765, %v1734, %v1346
        %v1768 = vsel %vm1765, %v1735, %v1348
        %v1769 = vsel %vm1765, %v1736, %v1350
        %v1770 = vsel %vm1765, %v1737, %v1352
        %v1771 = vsel %vm1765, %v1738, %v1354
        %v1772 = vsel %vm1765, %v1739, %v1356
        %v1773 = vsel %vm1765, %v1740, %v1358
        %v1774 = vsel %vm1765, %v1741, %v1360
        %v1775 = vsel %vm1765, %v1742, %v1362
        %v1776 = vsel %vm1765, %v1743, %v1364
        %v1777 = vsel %vm1765, %v1744, %v1366
        %v1778 = vsel %vm1765, %v1745, %v1368
        %v1779 = vsel %vm1765, %v1746, %v1370
        %v1780 = vsel %vm1765, %v1747, %v1372
        %v1781 = vsel %vm1765, %v1748, %v1374
        %v1782 = vsel %vm1765, %v1749, %v1376
        %v1783 = vsel %vm1765, %v1750, %v1378
        %v1784 = vsel %vm1765, %v1751, %v1380
        %v1785 = vsel %vm1765, %v1752, %v1382
        %v1786 = vsel %vm1765, %v1753, %v1384
        %v1787 = vsel %vm1765, %v1754, %v1386
        %v1788 = vsel %vm1765, %v1755, %v1388
        %v1789 = vsel %vm1765, %v1756, %v1390
        %v1790 = vsel %vm1765, %v1757, %v1392
        %v1791 = vsel %vm1765, %v1758, %v1394
        %v1792 = vsel %vm1765, %v1759, %v1396
        %v1793 = vsel %vm1765, %v1760, %v1398
        %v1794 = vsel %vm1765, %v1761, %v1400
        %v1795 = vsel %vm1765, %v1762, %v1402
        %v1796 = vsel %vm1765, %v1763, %v1404
        %v1797 = vsel %vm1765, %v1764, %v1406
        %vm1798 = vcmask 261120
        %v1799 = vsel %vm1798, %v1766, %v1472
        %v1800 = vsel %vm1798, %v1767, %v1474
        %v1801 = vsel %vm1798, %v1768, %v1476
        %v1802 = vsel %vm1798, %v1769, %v1478
        %v1803 = vsel %vm1798, %v1770, %v1480
        %v1804 = vsel %vm1798, %v1771, %v1482
        %v1805 = vsel %vm1798, %v1772, %v1484
        %v1806 = vsel %vm1798, %v1773, %v1486
        %v1807 = vsel %vm1798, %v1774, %v1488
        %v1808 = vsel %vm1798, %v1775, %v1490
        %v1809 = vsel %vm1798, %v1776, %v1492
        %v1810 = vsel %vm1798, %v1777, %v1494
        %v1811 = vsel %vm1798, %v1778, %v1496
        %v1812 = vsel %vm1798, %v1779, %v1498
        %v1813 = vsel %vm1798, %v1780, %v1500
        %v1814 = vsel %vm1798, %v1781, %v1502
        %v1815 = vsel %vm1798, %v1782, %v1504
        %v1816 = vsel %vm1798, %v1783, %v1506
        %v1817 = vsel %vm1798, %v1784, %v1508
        %v1818 = vsel %vm1798, %v1785, %v1510
        %v1819 = vsel %vm1798, %v1786, %v1512
        %v1820 = vsel %vm1798, %v1787, %v1514
        %v1821 = vsel %vm1798, %v1788, %v1516
        %v1822 = vsel %vm1798, %v1789, %v1518
        %v1823 = vsel %vm1798, %v1790, %v1520
        %v1824 = vsel %vm1798, %v1791, %v1522
        %v1825 = vsel %vm1798, %v1792, %v1524
        %v1826 = vsel %vm1798, %v1793, %v1526
        %v1827 = vsel %vm1798, %v1794, %v1528
        %v1828 = vsel %vm1798, %v1795, %v1530
        %v1829 = vsel %vm1798, %v1796, %v1532
        %v1830 = vsel %vm1798, %v1797, %v1534
        %v1831 = vpack.c.bf16 %v1800, %v1799
        %v1832 = vpack.c.bf16 %v1802, %v1801
        %v1833 = vpack.c.bf16 %v1804, %v1803
        %v1834 = vpack.c.bf16 %v1806, %v1805
        %v1835 = vpack.c.bf16 %v1808, %v1807
        %v1836 = vpack.c.bf16 %v1810, %v1809
        %v1837 = vpack.c.bf16 %v1812, %v1811
        %v1838 = vpack.c.bf16 %v1814, %v1813
        %v1839 = vpack.c.bf16 %v1816, %v1815
        %v1840 = vpack.c.bf16 %v1818, %v1817
        %v1841 = vpack.c.bf16 %v1820, %v1819
        %v1842 = vpack.c.bf16 %v1822, %v1821
        %v1843 = vpack.c.bf16 %v1824, %v1823
        %v1844 = vpack.c.bf16 %v1826, %v1825
        %v1845 = vpack.c.bf16 %v1828, %v1827
        %v1846 = vpack.c.bf16 %v1830, %v1829
        %v1847 = vld [vmem:[%s248] sm:$0xf]
        %v1848 = vld [vmem:[%s248 + $0x4] sm:$0xf]
        %v1849 = vld [vmem:[%s248 + $0x8] sm:$0xf]
        %v1850 = vld [vmem:[%s248 + $0xc] sm:$0xf]
        %v1851 = vld [vmem:[%s248 + $0x10] sm:$0x3]
        %v1852 = vld [vmem:[%s251] sm:$0x1]
        %v1854 = vlaneseq
        %v1855 = vshrl.u32 %v1854, 7
        %v1856 = vsub.s32 0, %v1855
        %v1857 = vrot.slane %v1852, %v1856
        %v1864 = vunpack.c.l.b16 %v1847
        %v1865 = vunpack.c.l.b16 %v1848
        %v1866 = vunpack.c.l.b16 %v1849
        %v1867 = vunpack.c.l.b16 %v1850
        %v1868 = vunpack.c.l.b16 %v1851
        %v1869 = vpack.c.b16 %v1865, %v1864
        %v1870 = vpack.c.b16 %v1867, %v1866
        %v1871 = vpack.c.b16 %v1868, %v1868
        %vm1874 = vcmask 293888
        %v1876 = vsel %vm1874, %v1831, 0
        %v1879 = vsel %vm1874, %v1832, 0
        %v1882 = vsel %vm1874, %v1833, 0
        %v1885 = vsel %vm1874, %v1834, 0
        %v1888 = vsel %vm1874, %v1835, 0
        %v1891 = vsel %vm1874, %v1836, 0
        %v1894 = vsel %vm1874, %v1837, 0
        %v1897 = vsel %vm1874, %v1838, 0
        %v1900 = vsel %vm1874, %v1839, 0
        %v1903 = vsel %vm1874, %v1840, 0
        %v1906 = vsel %vm1874, %v1841, 0
        %v1909 = vsel %vm1874, %v1842, 0
        %v1912 = vsel %vm1874, %v1843, 0
        %v1915 = vsel %vm1874, %v1844, 0
        %v1918 = vsel %vm1874, %v1845, 0
        %v1921 = vsel %vm1874, %v1846, 0
        %vm1923 = vcmask 1041408
        %v1925 = vsel %vm1923, %v1871, 0
        %1927 = vmatprep.subr.bf16.mxu0 0
        %1928 = vmatpush1.bf16.msra.mxu0 %v1869
        %1929 = vmatprep.subr.bf16.mxu0 0
        %1930 = vmatpush1.bf16.msra.mxu0 %v1870
        %1931 = vmatprep.subr.bf16.mxu0 0
        %1932 = vmatpush1.bf16.msra.mxu0 %v1925
        %1933 = vmatprep.subr.bf16.mxu0 0
        %1934 = vmatpush1.bf16.msra.mxu0 0
        %1935 = vmatprep.subr.bf16.mxu0 0
        %1936 = vmatpush1.bf16.msra.mxu0 0
        %1937 = vmatprep.subr.bf16.mxu0 0
        %1938 = vmatpush1.bf16.msra.mxu0 0
        %1939 = vmatprep.subr.bf16.mxu0 0
        %1940 = vmatpush1.bf16.msra.mxu0 0
        %1941 = vmatprep.subr.bf16.mxu0 0
        %1942 = vmatpush1.bf16.msra.mxu0 0
        %1943 = vmatprep.subr.bf16.mxu0 0
        %1944 = vmatpush1.bf16.msra.mxu0 0
        %1945 = vmatprep.subr.bf16.mxu0 0
        %1946 = vmatpush1.bf16.msra.mxu0 0
        %1947 = vmatprep.subr.bf16.mxu0 0
        %1948 = vmatpush1.bf16.msra.mxu0 0
        %1949 = vmatprep.subr.bf16.mxu0 0
        %1950 = vmatpush1.bf16.msra.mxu0 0
        %1951 = vmatprep.subr.bf16.mxu0 0
        %1952 = vmatpush1.bf16.msra.mxu0 0
        %1953 = vmatprep.subr.bf16.mxu0 0
        %1954 = vmatpush1.bf16.msra.mxu0 0
        %1955 = vmatprep.subr.bf16.mxu0 0
        %1956 = vmatpush1.bf16.msra.mxu0 0
        %1957 = vmatprep.subr.bf16.mxu0 0
        %1958 = vmatpush1.bf16.msra.mxu0 0
        %1959 = vmatprep.mubr.bf16.mxu0 0
        %1960 = vmatmul.mubr.bf16.gmra.mrb[0].mxu0 %v1876
        %v1961 = vpop.f32.mrb[0].mxu0
        %v1962 = vadd.f32 %v1857, %v1961
        %v1963 = vpop.f32.mrb[0].mxu0
        %v1964 = vpop.f32.mrb[0].mxu0
        %v1965 = vadd.f32 %v1857, %v1964
        %v1966 = vpop.f32.mrb[0].mxu0
        %1967 = vmatprep.mubr.bf16.mxu0 0
        %1968 = vmatmul.mubr.bf16.gmra.mrb[0].mxu0 %v1879
        %v1969 = vpop.f32.mrb[0].mxu0
        %v1970 = vadd.f32 %v1857, %v1969
        %v1971 = vpop.f32.mrb[0].mxu0
        %v1972 = vpop.f32.mrb[0].mxu0
        %v1973 = vadd.f32 %v1857, %v1972
        %v1974 = vpop.f32.mrb[0].mxu0
        %1975 = vmatprep.mubr.bf16.mxu0 0
        %1976 = vmatmul.mubr.bf16.gmra.mrb[0].mxu0 %v1882
        %v1977 = vpop.f32.mrb[0].mxu0
        %v1978 = vadd.f32 %v1857, %v1977
        %v1979 = vpop.f32.mrb[0].mxu0
        %v1980 = vpop.f32.mrb[0].mxu0
        %v1981 = vadd.f32 %v1857, %v1980
        %v1982 = vpop.f32.mrb[0].mxu0
        %1983 = vmatprep.mubr.bf16.mxu0 0
        %1984 = vmatmul.mubr.bf16.gmra.mrb[0].mxu0 %v1885
        %v1985 = vpop.f32.mrb[0].mxu0
        %v1986 = vadd.f32 %v1857, %v1985
        %v1987 = vpop.f32.mrb[0].mxu0
        %v1988 = vpop.f32.mrb[0].mxu0
        %v1989 = vadd.f32 %v1857, %v1988
        %v1990 = vpop.f32.mrb[0].mxu0
        %1991 = vmatprep.mubr.bf16.mxu0 0
        %1992 = vmatmul.mubr.bf16.gmra.mrb[0].mxu0 %v1888
        %v1993 = vpop.f32.mrb[0].mxu0
        %v1994 = vadd.f32 %v1857, %v1993
        %v1995 = vpop.f32.mrb[0].mxu0
        %v1996 = vpop.f32.mrb[0].mxu0
        %v1997 = vadd.f32 %v1857, %v1996
        %v1998 = vpop.f32.mrb[0].mxu0
        %1999 = vmatprep.mubr.bf16.mxu0 0
        %2000 = vmatmul.mubr.bf16.gmra.mrb[0].mxu0 %v1891
        %v2001 = vpop.f32.mrb[0].mxu0
        %v2002 = vadd.f32 %v1857, %v2001
        %v2003 = vpop.f32.mrb[0].mxu0
        %v2004 = vpop.f32.mrb[0].mxu0
        %v2005 = vadd.f32 %v1857, %v2004
        %v2006 = vpop.f32.mrb[0].mxu0
        %2007 = vmatprep.mubr.bf16.mxu0 0
        %2008 = vmatmul.mubr.bf16.gmra.mrb[0].mxu0 %v1894
        %v2009 = vpop.f32.mrb[0].mxu0
        %v2010 = vadd.f32 %v1857, %v2009
        %v2011 = vpop.f32.mrb[0].mxu0
        %v2012 = vpop.f32.mrb[0].mxu0
        %v2013 = vadd.f32 %v1857, %v2012
        %v2014 = vpop.f32.mrb[0].mxu0
        %2015 = vmatprep.mubr.bf16.mxu0 0
        %2016 = vmatmul.mubr.bf16.gmra.mrb[0].mxu0 %v1897
        %v2017 = vpop.f32.mrb[0].mxu0
        %v2018 = vadd.f32 %v1857, %v2017
        %v2019 = vpop.f32.mrb[0].mxu0
        %v2020 = vpop.f32.mrb[0].mxu0
        %v2021 = vadd.f32 %v1857, %v2020
        %v2022 = vpop.f32.mrb[0].mxu0
        %2023 = vmatprep.mubr.bf16.mxu0 0
        %2024 = vmatmul.mubr.bf16.gmra.mrb[0].mxu0 %v1900
        %v2025 = vpop.f32.mrb[0].mxu0
        %v2026 = vadd.f32 %v1857, %v2025
        %v2027 = vpop.f32.mrb[0].mxu0
        %v2028 = vpop.f32.mrb[0].mxu0
        %v2029 = vadd.f32 %v1857, %v2028
        %v2030 = vpop.f32.mrb[0].mxu0
        %2031 = vmatprep.mubr.bf16.mxu0 0
        %2032 = vmatmul.mubr.bf16.gmra.mrb[0].mxu0 %v1903
        %v2033 = vpop.f32.mrb[0].mxu0
        %v2034 = vadd.f32 %v1857, %v2033
        %v2035 = vpop.f32.mrb[0].mxu0
        %v2036 = vpop.f32.mrb[0].mxu0
        %v2037 = vadd.f32 %v1857, %v2036
        %v2038 = vpop.f32.mrb[0].mxu0
        %2039 = vmatprep.mubr.bf16.mxu0 0
        %2040 = vmatmul.mubr.bf16.gmra.mrb[0].mxu0 %v1906
        %v2041 = vpop.f32.mrb[0].mxu0
        %v2042 = vadd.f32 %v1857, %v2041
        %v2043 = vpop.f32.mrb[0].mxu0
        %v2044 = vpop.f32.mrb[0].mxu0
        %v2045 = vadd.f32 %v1857, %v2044
        %v2046 = vpop.f32.mrb[0].mxu0
        %2047 = vmatprep.mubr.bf16.mxu0 0
        %2048 = vmatmul.mubr.bf16.gmra.mrb[0].mxu0 %v1909
        %v2049 = vpop.f32.mrb[0].mxu0
        %v2050 = vadd.f32 %v1857, %v2049
        %v2051 = vpop.f32.mrb[0].mxu0
        %v2052 = vpop.f32.mrb[0].mxu0
        %v2053 = vadd.f32 %v1857, %v2052
        %v2054 = vpop.f32.mrb[0].mxu0
        %2055 = vmatprep.mubr.bf16.mxu0 0
        %2056 = vmatmul.mubr.bf16.gmra.mrb[0].mxu0 %v1912
        %v2057 = vpop.f32.mrb[0].mxu0
        %v2058 = vadd.f32 %v1857, %v2057
        %v2059 = vpop.f32.mrb[0].mxu0
        %v2060 = vpop.f32.mrb[0].mxu0
        %v2061 = vadd.f32 %v1857, %v2060
        %v2062 = vpop.f32.mrb[0].mxu0
        %2063 = vmatprep.mubr.bf16.mxu0 0
        %2064 = vmatmul.mubr.bf16.gmra.mrb[0].mxu0 %v1915
        %v2065 = vpop.f32.mrb[0].mxu0
        %v2066 = vadd.f32 %v1857, %v2065
        %v2067 = vpop.f32.mrb[0].mxu0
        %v2068 = vpop.f32.mrb[0].mxu0
        %v2069 = vadd.f32 %v1857, %v2068
        %v2070 = vpop.f32.mrb[0].mxu0
        %2071 = vmatprep.mubr.bf16.mxu0 0
        %2072 = vmatmul.mubr.bf16.gmra.mrb[0].mxu0 %v1918
        %v2073 = vpop.f32.mrb[0].mxu0
        %v2074 = vadd.f32 %v1857, %v2073
        %v2075 = vpop.f32.mrb[0].mxu0
        %v2076 = vpop.f32.mrb[0].mxu0
        %v2077 = vadd.f32 %v1857, %v2076
        %v2078 = vpop.f32.mrb[0].mxu0
        %2079 = vmatprep.mubr.bf16.mxu0 0
        %2080 = vmatmul.mubr.bf16.gmra.mrb[0].mxu0 %v1921
        %v2081 = vpop.f32.mrb[0].mxu0
        %v2082 = vadd.f32 %v1857, %v2081
        %v2083 = vpop.f32.mrb[0].mxu0
        %v2084 = vpop.f32.mrb[0].mxu0
        %v2085 = vadd.f32 %v1857, %v2084
        %v2086 = vpop.f32.mrb[0].mxu0
        %2087 = vdwg.mxu0
        %v2088 = vadd.f32 %v1962, %v1965
        %v2089 = vadd.f32 %v2088, %v1970
        %v2090 = vadd.f32 %v2089, %v1973
        %v2091 = vadd.f32 %v2090, %v1978
        %v2092 = vadd.f32 %v2091, %v1981
        %v2093 = vadd.f32 %v2092, %v1986
        %v2094 = vadd.f32 %v2093, %v1989
        %v2095 = vadd.f32 %v2094, %v1994
        %v2096 = vadd.f32 %v2095, %v1997
        %v2097 = vadd.f32 %v2096, %v2002
        %v2098 = vadd.f32 %v2097, %v2005
        %v2099 = vadd.f32 %v2098, %v2010
        %v2100 = vadd.f32 %v2099, %v2013
        %v2101 = vadd.f32 %v2100, %v2018
        %v2102 = vadd.f32 %v2101, %v2021
        %v2103 = vadd.f32 %v2102, %v2026
        %v2104 = vadd.f32 %v2103, %v2029
        %v2105 = vadd.f32 %v2104, %v2034
        %v2106 = vadd.f32 %v2105, %v2037
        %v2107 = vadd.f32 %v2106, %v2042
        %v2108 = vadd.f32 %v2107, %v2045
        %v2109 = vadd.f32 %v2108, %v2050
        %v2110 = vadd.f32 %v2109, %v2053
        %v2111 = vadd.f32 %v2110, %v2058
        %v2112 = vadd.f32 %v2111, %v2061
        %v2113 = vadd.f32 %v2112, %v2066
        %v2114 = vadd.f32 %v2113, %v2069
        %v2115 = vadd.f32 %v2114, %v2074
        %v2116 = vadd.f32 %v2115, %v2077
        %v2117 = vadd.f32 %v2116, %v2082
        %v2118 = vadd.f32 %v2117, %v2085
        %v2119 = vrot.slane %v2118, 4
        %v2120 = vadd.f32 %v2118, %v2119
        %v2121 = vrot.slane %v2120, 2
        %v2122 = vadd.f32 %v2120, %v2121
        %v2123 = vrot.slane %v2122, 1
        %v2124 = vadd.f32 %v2122, %v2123
        %2125 = vst [vmem:[%s233] sm:$0x1] %v2124
        %v2126 = vmul.f32 %v1962, %v1962
        %v2127 = vmul.f32 %v1965, %v1965
        %v2128 = vmul.f32 %v1970, %v1970
        %v2129 = vmul.f32 %v1973, %v1973
        %v2130 = vmul.f32 %v1978, %v1978
        %v2131 = vmul.f32 %v1981, %v1981
        %v2132 = vmul.f32 %v1986, %v1986
        %v2133 = vmul.f32 %v1989, %v1989
        %v2134 = vmul.f32 %v1994, %v1994
        %v2135 = vmul.f32 %v1997, %v1997
        %v2136 = vmul.f32 %v2002, %v2002
        %v2137 = vmul.f32 %v2005, %v2005
        %v2138 = vmul.f32 %v2010, %v2010
        %v2139 = vmul.f32 %v2013, %v2013
        %v2140 = vmul.f32 %v2018, %v2018
        %v2141 = vmul.f32 %v2021, %v2021
        %v2142 = vmul.f32 %v2026, %v2026
        %v2143 = vmul.f32 %v2029, %v2029
        %v2144 = vmul.f32 %v2034, %v2034
        %v2145 = vmul.f32 %v2037, %v2037
        %v2146 = vmul.f32 %v2042, %v2042
        %v2147 = vmul.f32 %v2045, %v2045
        %v2148 = vmul.f32 %v2050, %v2050
        %v2149 = vmul.f32 %v2053, %v2053
        %v2150 = vmul.f32 %v2058, %v2058
        %v2151 = vmul.f32 %v2061, %v2061
        %v2152 = vmul.f32 %v2066, %v2066
        %v2153 = vmul.f32 %v2069, %v2069
        %v2154 = vmul.f32 %v2074, %v2074
        %v2155 = vmul.f32 %v2077, %v2077
        %v2156 = vmul.f32 %v2082, %v2082
        %v2157 = vmul.f32 %v2085, %v2085
        %v2158 = vadd.f32 %v2126, %v2127
        %v2159 = vadd.f32 %v2158, %v2128
        %v2160 = vadd.f32 %v2159, %v2129
        %v2161 = vadd.f32 %v2160, %v2130
        %v2162 = vadd.f32 %v2161, %v2131
        %v2163 = vadd.f32 %v2162, %v2132
        %v2164 = vadd.f32 %v2163, %v2133
        %v2165 = vadd.f32 %v2164, %v2134
        %v2166 = vadd.f32 %v2165, %v2135
        %v2167 = vadd.f32 %v2166, %v2136
        %v2168 = vadd.f32 %v2167, %v2137
        %v2169 = vadd.f32 %v2168, %v2138
        %v2170 = vadd.f32 %v2169, %v2139
        %v2171 = vadd.f32 %v2170, %v2140
        %v2172 = vadd.f32 %v2171, %v2141
        %v2173 = vadd.f32 %v2172, %v2142
        %v2174 = vadd.f32 %v2173, %v2143
        %v2175 = vadd.f32 %v2174, %v2144
        %v2176 = vadd.f32 %v2175, %v2145
        %v2177 = vadd.f32 %v2176, %v2146
        %v2178 = vadd.f32 %v2177, %v2147
        %v2179 = vadd.f32 %v2178, %v2148
        %v2180 = vadd.f32 %v2179, %v2149
        %v2181 = vadd.f32 %v2180, %v2150
        %v2182 = vadd.f32 %v2181, %v2151
        %v2183 = vadd.f32 %v2182, %v2152
        %v2184 = vadd.f32 %v2183, %v2153
        %v2185 = vadd.f32 %v2184, %v2154
        %v2186 = vadd.f32 %v2185, %v2155
        %v2187 = vadd.f32 %v2186, %v2156
        %v2188 = vadd.f32 %v2187, %v2157
        %v2189 = vrot.slane %v2188, 4
        %v2190 = vadd.f32 %v2188, %v2189
        %v2191 = vrot.slane %v2190, 2
        %v2192 = vadd.f32 %v2190, %v2191
        %v2193 = vrot.slane %v2192, 1
        %v2194 = vadd.f32 %v2192, %v2193
        %2195 = vst [vmem:[%s239] sm:$0x1] %v2194
        %s2196 = sand.u32 %s122, 1
        %s2197 = scalar_lea.sflag [#allocation3], %s2196
        %s2198 = sand.u32 %s122, 1
        %s2199 = scalar_lea.vmem [#allocation2], %s2198
        %s2200 = sand.u32 %s150, 1
        %s2201 = scalar_lea.sflag [#allocation5], %s2200
        %s2202 = sand.u32 %s150, 1
        %s2203 = scalar_lea.vmem [#allocation4], %s2202
        // Predicated region
        $region33: #{tpu_custom_call.1} parent=31 // pred_check
          %p2204 = pneg %p132
        $region34: #{tpu_custom_call.1} parent=31 // pred_check_branch
          %2206 = sbr.rel (%p2204) target = $region36
        $region35: #{tpu_custom_call.1} parent=31 // pred_region
          %s2208 = ssub.s32 16, 16
          %2209 = vsyncadd %s2197, %s2208
          %s2210 = sadd.s32 %s27, %s26
          %s2211 = smul.addr %s2210, 16
          %s2212 = scalar_lea.hbm %s3, %s2211
          %s2214 = sshll.u32 %s2199, 4
          %s2215 = int_to_ptr.vmem [resolvable:$true] %s2214
          %2217 = dma.vmem_to_hbm [thread:$0]  %s2215, 16, %s2212, %s2197
        $region36: #{tpu_custom_call.1} parent=31 // pred_fallthru
          _
        // Predicated region
        $region37: #{tpu_custom_call.1} parent=31 // pred_check
          %p2218 = pneg %p160
        $region38: #{tpu_custom_call.1} parent=31 // pred_check_branch
          %2220 = sbr.rel (%p2218) target = $region40
        $region39: #{tpu_custom_call.1} parent=31 // pred_region
          %s2222 = ssub.s32 16, 16
          %2223 = vsyncadd %s2201, %s2222
          %s2224 = sadd.s32 %s27, %s26
          %s2225 = smul.addr %s2224, 16
          %s2226 = scalar_lea.hbm %s4, %s2225
          %s2228 = sshll.u32 %s2203, 4
          %s2229 = int_to_ptr.vmem [resolvable:$true] %s2228
          %2231 = dma.vmem_to_hbm [thread:$0]  %s2229, 16, %s2226, %s2201
        $region40: #{tpu_custom_call.1} parent=31 // pred_fallthru
          _
      $region32: #{tpu_custom_call.1} parent=5 // pred_fallthru
        _
      %p2232 = scmp.le.s32.totalorder 2, %s17
      // Predicated region
      $region41: #{tpu_custom_call.1} parent=5 // pred_check
        %p2233 = pneg %p2232
      $region42: #{tpu_custom_call.1} parent=5 // pred_check_branch
        %2235 = sbr.rel (%p2233) target = $region44
      $region43: #{tpu_custom_call.1} parent=5 // pred_region
        %s2236 = ssub.s32 %s17, 2
        // Predicated region
        $region45: #{tpu_custom_call.1} parent=43 // pred_check
          %p2237 = pneg %p138
        $region46: #{tpu_custom_call.1} parent=43 // pred_check_branch
          %2239 = sbr.rel (%p2237) target = $region48
        $region47: #{tpu_custom_call.1} parent=43 // pred_region
          %s2240 = sand.u32 %s123, 1
          %s2241 = scalar_lea.sflag [#allocation3], %s2240
          %s2242 = sand.u32 %s123, 1
          %s2243 = scalar_lea.vmem [#allocation2], %s2242
          %2244 = dma.done %s2241, 16
        $region48: #{tpu_custom_call.1} parent=43 // pred_fallthru
          _
        // Predicated region
        $region49: #{tpu_custom_call.1} parent=43 // pred_check
          %p2245 = pneg %p166
        $region50: #{tpu_custom_call.1} parent=43 // pred_check_branch
          %2247 = sbr.rel (%p2245) target = $region52
        $region51: #{tpu_custom_call.1} parent=43 // pred_region
          %s2248 = sand.u32 %s151, 1
          %s2249 = scalar_lea.sflag [#allocation5], %s2248
          %s2250 = sand.u32 %s151, 1
          %s2251 = scalar_lea.vmem [#allocation4], %s2250
          %2252 = dma.done %s2249, 16
        $region52: #{tpu_custom_call.1} parent=43 // pred_fallthru
          _
      $region44: #{tpu_custom_call.1} parent=5 // pred_fallthru
        _
    $region6: #{tpu_custom_call.1} parent=1 // loop_footer
      %s21 = sadd.s32 1, %s17
    $region7: #{tpu_custom_call.1} parent=1 // loop_footer_branch
      %16 = sbr.rel target = $region3
    $region8: #{tpu_custom_call.1} parent=1 // loop_exit
      _
    %2253 = vsyncpa [#allocation3], 1
    %s2254 = scalar_lea.sflag [#allocation3], 1
    %2255 = vsyncpa %s2254, 1
    %2256 = vsyncpa [#allocation5], 1
    %s2257 = scalar_lea.sflag [#allocation5], 1
    %2258 = vsyncpa %s2257, 1

</llo_original>
